<compile_context>
chip_gen: v5e
topology: v5e:2x2
jax: 0.10.0
libtpu: 0.0.40
codegen_flags: <defaults>
</compile_context>

<pallas_src>
import functools

import numpy as np
import jax
import jax.numpy as jnp
from jax.experimental import pallas as pl
from jax.experimental.pallas import tpu as pltpu


def _round_up(x, m):
    return ((x + m - 1) // m) * m


def _vmem_capacity_bytes():
    """Per-core VMEM capacity; conservative v7x default if the query fails."""
    default = 64 * 1024 * 1024
    try:
        info = pltpu.get_tpu_info()
    except Exception:
        return default
    for attr in ("vmem_capacity_bytes", "vmem_bytes", "vmem_size_bytes",
                 "vmem_capacity"):
        v = getattr(info, attr, None)
        if v:
            try:
                return int(v)
            except Exception:
                pass
    return default


def _sdconv_kernel(u_ref, v_ref, w_ref, m_ref, o_ref, *scratch,
                   shifts, inv_lam2, cc, n_chunks, fused):
    """One (lane-group, oc-block, channel-chunk) grid step.

    u_ref, v_ref : (Cc, L)                channel chunk x lane block (whole images)
    w_ref        : fused   -> (OC_blk, 8*Cc)  bf16
                   per-off -> (8, OC_blk, Cc) bf16
    m_ref        : (8, L)                 1.0 where the k-th neighbor is in bounds
    o_ref        : (OC_blk, L)            resident across the channel-chunk axis
    scratch      : [su (8*Cc, L) bf16 if fused] [acc (OC_blk, L) f32 if n_chunks>1]
    """
    idx = 0
    su_ref = None
    acc_ref = None
    if fused:
        su_ref = scratch[idx]
        idx += 1
    if n_chunks > 1:
        acc_ref = scratch[idx]
        idx += 1

    c = pl.program_id(2)
    u = u_ref[...]
    v = v_ref[...]

    def weighted_diff(kp, shift):
        m = m_ref[kp:kp + 1, :]                        # (1, L) boundary mask
        # Neighbor values under zero padding: roll on the lane axis + mask.
        u_n = pltpu.roll(u, shift=shift, axis=1) * m
        v_n = pltpu.roll(v, shift=shift, axis=1) * m
        du = u_n - u
        dv = v_n - v
        s = jax.lax.rsqrt(1.0 + dv * dv * inv_lam2)    # EUP rsqrt, input dtype
        return du * s

    if fused:
        # All 8 weighted diffs into a bf16 scratch, one fused MXU contraction.
        for kp, shift in enumerate(shifts):            # 8 non-center offsets
            su_ref[kp * cc:(kp + 1) * cc, :] = (
                weighted_diff(kp, shift).astype(su_ref.dtype))
        res = jnp.dot(w_ref[...], su_ref[...],
                      preferred_element_type=jnp.float32)
    else:
        # Small-OC path: per-offset dots, no scratch round-trip.
        res = None
        for kp, shift in enumerate(shifts):
            su_k = weighted_diff(kp, shift).astype(jnp.bfloat16)
            part = jnp.dot(w_ref[kp], su_k, preferred_element_type=jnp.float32)
            res = part if res is None else res + part

    if n_chunks == 1:
        o_ref[...] = res.astype(o_ref.dtype)
    else:
        @pl.when(c == 0)
        def _():
            acc_ref[...] = jnp.zeros_like(acc_ref)

        acc_ref[...] += res

        @pl.when(c == n_chunks - 1)
        def _():
            o_ref[...] = acc_ref[...].astype(o_ref.dtype)


def sdconv(U, V, weight, lambda_):
    """Pallas SDConv forward.  U, V: (BN, C, W, H); weight: (OC, C, 3, 3)."""
    assert U.shape == V.shape
    BN, C, W, H = U.shape
    OC = weight.shape[0]
    assert weight.shape[1] == C
    assert W >= 2 and H >= 2, "degenerate spatial dims unsupported by roll+mask path"

    HW = W * H
    HWp = _round_up(HW, 128)            # lane-dense output stores (unmasked vst)
    OCp = _round_up(OC, 8)
    in_isz = jnp.dtype(U.dtype).itemsize
    out_isz = in_isz

    capacity = _vmem_capacity_bytes()
    budget = max(capacity - 24 * 1024 * 1024, capacity // 2)

    def footprint(cc, lanes, oc_blk):
        is_fused = oc_blk >= cc
        f = 2 * 2 * cc * lanes * in_isz          # U, V blocks (double-buffered)
        f += 2 * oc_blk * 8 * cc * 2             # bf16 weights (double-buffered)
        f += 2 * 8 * lanes * in_isz              # masks
        f += 2 * oc_blk * lanes * out_isz        # output block (double-buffered)
        if is_fused:
            f += 8 * cc * lanes * 2              # bf16 su scratch
        f += oc_blk * lanes * 4                  # f32 accumulator (worst case)
        return f

    # ---- pick lane-group size G (whole images per block) and channel chunk Cc
    lane_target = 2048
    G = max(1, min(BN, lane_target // HWp))
    if BN >= 2:
        G = min(G, max(1, BN // 2))      # keep >=2 parallel groups for 2-TC chips

    Cc = None
    while True:
        BNp = _round_up(BN, G)
        n_groups = BNp // G
        L = G * HWp
        oc_split = 2 if (n_groups == 1 and OCp % 16 == 0) else 1
        OC_blk = OCp // oc_split
        for cand in range(_round_up(C, 16), 15, -16):   # multiples of 16
            if footprint(cand, L, OC_blk) <= budget:
                Cc = cand
                break
        if Cc is not None or G == 1:
            break
        G = max(1, G // 2)
    if Cc is None:
        # TODO(synk): halo-DMA spatial tiling for planes too large for VMEM.
        Cc = 16

    Cp = _round_up(C, Cc)
    n_chunks = Cp // Cc
    fused = OC_blk >= Cc
    L = G * HWp

    # ---- host-side layout: (Cp, BNp*HWp), whole images per lane segment ----
    def prep(x):
        x = x.reshape(BN, C, HW)
        x = jnp.pad(x, ((0, BNp - BN), (0, Cp - C), (0, HWp - HW)))
        return jnp.transpose(x, (1, 0, 2)).reshape(Cp, BNp * HWp)

    u_t = prep(U)
    v_t = prep(V)

    # Non-center 3x3 offsets in unfold order (k = 3*di + dj, center dropped).
    offs = [(di, dj) for di in range(3) for dj in range(3) if (di, dj) != (1, 1)]

    # Weights (bf16), per channel-chunk blocks, layout per kernel variant.
    w_p = jnp.pad(weight, ((0, OCp - OC), (0, Cp - C), (0, 0), (0, 0)))
    w_p = w_p.astype(jnp.bfloat16)
    w_off = jnp.stack([w_p[:, :, di, dj] for (di, dj) in offs], axis=0)  # (8,OCp,Cp)
    w_off = w_off.reshape(8, OCp, n_chunks, Cc)
    if fused:
        w_arr = jnp.transpose(w_off, (2, 1, 0, 3)).reshape(n_chunks, OCp, 8 * Cc)
        w_spec = pl.BlockSpec((pl.Squeezed(), OC_blk, 8 * Cc),
                              lambda g, o, c: (c, o, 0))
    else:
        w_arr = jnp.transpose(w_off, (2, 0, 1, 3))        # (n_chunks, 8, OCp, Cc)
        w_spec = pl.BlockSpec((pl.Squeezed(), 8, OC_blk, Cc),
                              lambda g, o, c: (c, 0, o, 0))

    # Boundary masks per offset for one image (8, HWp), tiled across the block.
    # Padded spatial columns and cross-image roll wrap are masked to zero.
    ii, jj = np.meshgrid(np.arange(W), np.arange(H), indexing="ij")
    mask_img = np.zeros((8, HWp), np.float32)
    for k, (di, dj) in enumerate(offs):
        ok = (((ii + di - 1) >= 0) & ((ii + di - 1) < W) &
              ((jj + dj - 1) >= 0) & ((jj + dj - 1) < H)).reshape(-1)
        mask_img[k, :HW] = ok.astype(np.float32)
    masks = jnp.asarray(np.tile(mask_img, (1, G)), dtype=U.dtype)   # (8, L)

    # roll shift so rolled[p] = x[p + (di-1)*H + (dj-1)]; in-bounds neighbors
    # never cross an image segment, out-of-bounds ones are masked to zero.
    shifts = tuple((-((di - 1) * H + (dj - 1))) % L for (di, dj) in offs)

    scratch_shapes = []
    if fused:
        scratch_shapes.append(pltpu.VMEM((8 * Cc, L), jnp.bfloat16))
    if n_chunks > 1:
        scratch_shapes.append(pltpu.VMEM((OC_blk, L), jnp.float32))

    kernel = functools.partial(
        _sdconv_kernel, shifts=shifts,
        inv_lam2=float(1.0 / (lambda_ * lambda_)),
        cc=Cc, n_chunks=n_chunks, fused=fused)

    cost = pl.CostEstimate(
        flops=int(2 * 8 * Cp * OCp * BNp * HWp),
        transcendentals=int(8 * Cp * BNp * HWp * oc_split),
        bytes_accessed=int(2 * Cp * BNp * HWp * in_isz * oc_split
                           + OCp * BNp * HWp * out_isz
                           + n_groups * oc_split * OCp * 8 * Cp * 2))

    vmem_limit = int(min(capacity - 4 * 1024 * 1024,
                         max(32 * 1024 * 1024,
                             footprint(Cc, L, OC_blk) + 16 * 1024 * 1024)))

    out2d = pl.pallas_call(
        kernel,
        out_shape=jax.ShapeDtypeStruct((OCp, BNp * HWp), U.dtype),
        grid_spec=pltpu.PrefetchScalarGridSpec(
            num_scalar_prefetch=0,
            grid=(n_groups, oc_split, n_chunks),
            in_specs=[
                pl.BlockSpec((Cc, L), lambda g, o, c: (c, g)),
                pl.BlockSpec((Cc, L), lambda g, o, c: (c, g)),
                w_spec,
                pl.BlockSpec((8, L), lambda g, o, c: (0, 0)),   # resident masks
            ],
            out_specs=pl.BlockSpec((OC_blk, L), lambda g, o, c: (o, g)),
            scratch_shapes=scratch_shapes,
        ),
        compiler_params=pltpu.CompilerParams(
            dimension_semantics=("parallel", "parallel", "arbitrary"),
            vmem_limit_bytes=vmem_limit,
        ),
        cost_estimate=cost,
    )(u_t, v_t, w_arr, masks)

    out = out2d.reshape(OCp, BNp, HWp).transpose(1, 0, 2)[:BN, :OC, :HW]
    return out.reshape(BN, OC, W, H)


# ----------------------------- pure-JAX reference -----------------------------

def _unfold3x3(x):
    # x: (BN, C, W, H) -> (BN, 9, C, W*H); kernel=3, stride=1, padding=1 (zeros).
    BN, C, W, H = x.shape
    xp = jnp.pad(x, ((0, 0), (0, 0), (1, 1), (1, 1)))
    patches = [xp[:, :, di:di + W, dj:dj + H] for di in range(3) for dj in range(3)]
    return jnp.stack(patches, axis=1).reshape(BN, 9, C, W * H)


def sdconv_ref(U, V, weight, lambda_):
    # Mirrors the PyTorch forward exactly (f32 throughout).
    BN, C, W, H = U.shape
    OC = weight.shape[0]
    u_nb = _unfold3x3(U).reshape(BN, 9, C, W, H)
    v_nb = _unfold3x3(V).reshape(BN, 9, C, W, H)
    du = u_nb - u_nb[:, 4:5]
    dv = v_nb - v_nb[:, 4:5]
    sv = 1.0 / jnp.sqrt(1.0 + jnp.square(jnp.abs(dv)) / (lambda_ ** 2))
    su = du * sv                                     # (BN, 9, C, W, H)
    w = weight.reshape(OC, C, 9)
    return jnp.einsum('bkcwh,nck->bnwh', su, w)


if __name__ == "__main__":
    BN, C_IN, C_OUT, W, H = 2, 4, 8, 16, 16
    LAMBDA = 1.0

    key = jax.random.PRNGKey(0)
    k1, k2, k3 = jax.random.split(key, 3)
    U = jax.random.normal(k1, (BN, C_IN, W, H), jnp.float32)
    V = jax.random.normal(k2, (BN, C_IN, W, H), jnp.float32)
    # nn.init.uniform_(weight, -0.1, 0.1), deterministic in-script.
    weight = jax.random.uniform(k3, (C_OUT, C_IN, 3, 3), jnp.float32,
                                minval=-0.1, maxval=0.1)

    out = sdconv(U, V, weight, LAMBDA)
    out = jax.block_until_ready(out)

    ref = sdconv_ref(U, V, weight, LAMBDA)
    assert out.shape == (BN, C_OUT, W, H)
    # Tolerances account for the (reviewed) bf16 weight/diff matmul operands
    # with f32 MXU accumulation; reference is pure f32.
    np.testing.assert_allclose(np.asarray(out), np.asarray(ref),
                               rtol=2e-2, atol=2e-2)
    print("KERNEL_OK")
</pallas_src>

<mosaic_0001>
module attributes {stable_mosaic.version = 11 : i64} {
  func.func @_sdconv_kernel(%arg0: i32, %arg1: i32, %arg2: i32, %arg3: memref<16x256xf32, #tpu.memory_space<vmem>>, %arg4: memref<16x256xf32, #tpu.memory_space<vmem>>, %arg5: memref<1x8x8x16xbf16, #tpu.memory_space<vmem>>, %arg6: memref<8x256xf32, #tpu.memory_space<vmem>>, %arg7: memref<8x256xf32, #tpu.memory_space<vmem>>) attributes {dimension_semantics = [#tpu.dimension_semantics<parallel>, #tpu.dimension_semantics<parallel>, #tpu.dimension_semantics<arbitrary>], iteration_bounds = array<i64: 2, 1, 1>, scalar_prefetch = 0 : i64, scratch_operands = 0 : i64, tpu.core_type = #tpu.core_type<tc>, window_params = [{transform_indices = @transform_0, window_bounds = array<i64: 16, 256>}, {transform_indices = @transform_1, window_bounds = array<i64: 16, 256>}, {transform_indices = @transform_2, window_bounds = array<i64: 1, 8, 8, 16>}, {pipeline_mode = #tpu.pipeline_mode<synchronous>, transform_indices = @transform_3, window_bounds = array<i64: 8, 256>}, {transform_indices = @transform_4, window_bounds = array<i64: 8, 256>}]} {
    %c0 = arith.constant 0 : index
    %c0_0 = arith.constant 0 : index
    %0 = vector.load %arg3[%c0, %c0_0] : memref<16x256xf32, #tpu.memory_space<vmem>>, vector<16x256xf32>
    %c0_1 = arith.constant 0 : index
    %c0_2 = arith.constant 0 : index
    %1 = vector.load %arg4[%c0_1, %c0_2] : memref<16x256xf32, #tpu.memory_space<vmem>>, vector<16x256xf32>
    %c0_3 = arith.constant 0 : index
    %c0_4 = arith.constant 0 : index
    %2 = vector.load %arg6[%c0_3, %c0_4] : memref<8x256xf32, #tpu.memory_space<vmem>>, vector<1x256xf32>
    %c17_i32 = arith.constant 17 : i32
    %3 = tpu.dynamic_rotate %0 by %c17_i32 dim 1 : vector<16x256xf32>, i32 -> vector<16x256xf32>
    %4 = vector.broadcast %2 : vector<1x256xf32> to vector<16x256xf32>
    %5 = arith.mulf %3, %4 : vector<16x256xf32>
    %c17_i32_5 = arith.constant 17 : i32
    %6 = tpu.dynamic_rotate %1 by %c17_i32_5 dim 1 : vector<16x256xf32>, i32 -> vector<16x256xf32>
    %7 = vector.broadcast %2 : vector<1x256xf32> to vector<16x256xf32>
    %8 = arith.mulf %6, %7 : vector<16x256xf32>
    %9 = arith.subf %5, %0 : vector<16x256xf32>
    %10 = arith.subf %8, %1 : vector<16x256xf32>
    %11 = arith.mulf %10, %10 : vector<16x256xf32>
    %cst = arith.constant 1.000000e+00 : f32
    %12 = vector.broadcast %cst : f32 to vector<16x256xf32>
    %13 = arith.mulf %11, %12 : vector<16x256xf32>
    %cst_6 = arith.constant 1.000000e+00 : f32
    %14 = vector.broadcast %cst_6 : f32 to vector<16x256xf32>
    %15 = arith.addf %14, %13 : vector<16x256xf32>
    %16 = math.rsqrt %15 : vector<16x256xf32>
    %17 = arith.mulf %9, %16 : vector<16x256xf32>
    %18 = arith.truncf %17 : vector<16x256xf32> to vector<16x256xbf16>
    %c0_7 = arith.constant 0 : index
    %c0_8 = arith.constant 0 : index
    %c0_9 = arith.constant 0 : index
    %c0_10 = arith.constant 0 : index
    %19 = vector.load %arg5[%c0_7, %c0_8, %c0_9, %c0_10] : memref<1x8x8x16xbf16, #tpu.memory_space<vmem>>, vector<1x1x8x16xbf16>
    %20 = vector.shape_cast %19 : vector<1x1x8x16xbf16> to vector<8x16xbf16>
    %cst_11 = arith.constant dense<0.000000e+00> : vector<8x256xf32>
    %21 = tpu.matmul %20, %18, %cst_11 {dimension_numbers = #tpu.dot_dimension_numbers<[1], [0], [0], [1], [0, 0, 1, 1], [], []>} : vector<8x16xbf16>, vector<16x256xbf16>, vector<8x256xf32> -> vector<8x256xf32>
    %c1 = arith.constant 1 : index
    %c0_12 = arith.constant 0 : index
    %22 = vector.load %arg6[%c1, %c0_12] : memref<8x256xf32, #tpu.memory_space<vmem>>, vector<1x256xf32>
    %c16_i32 = arith.constant 16 : i32
    %23 = tpu.dynamic_rotate %0 by %c16_i32 dim 1 : vector<16x256xf32>, i32 -> vector<16x256xf32>
    %24 = vector.broadcast %22 : vector<1x256xf32> to vector<16x256xf32>
    %25 = arith.mulf %23, %24 : vector<16x256xf32>
    %c16_i32_13 = arith.constant 16 : i32
    %26 = tpu.dynamic_rotate %1 by %c16_i32_13 dim 1 : vector<16x256xf32>, i32 -> vector<16x256xf32>
    %27 = vector.broadcast %22 : vector<1x256xf32> to vector<16x256xf32>
    %28 = arith.mulf %26, %27 : vector<16x256xf32>
    %29 = arith.subf %25, %0 : vector<16x256xf32>
    %30 = arith.subf %28, %1 : vector<16x256xf32>
    %31 = arith.mulf %30, %30 : vector<16x256xf32>
    %cst_14 = arith.constant 1.000000e+00 : f32
    %32 = vector.broadcast %cst_14 : f32 to vector<16x256xf32>
    %33 = arith.mulf %31, %32 : vector<16x256xf32>
    %cst_15 = arith.constant 1.000000e+00 : f32
    %34 = vector.broadcast %cst_15 : f32 to vector<16x256xf32>
    %35 = arith.addf %34, %33 : vector<16x256xf32>
    %36 = math.rsqrt %35 : vector<16x256xf32>
    %37 = arith.mulf %29, %36 : vector<16x256xf32>
    %38 = arith.truncf %37 : vector<16x256xf32> to vector<16x256xbf16>
    %c0_16 = arith.constant 0 : index
    %c1_17 = arith.constant 1 : index
    %c0_18 = arith.constant 0 : index
    %c0_19 = arith.constant 0 : index
    %39 = vector.load %arg5[%c0_16, %c1_17, %c0_18, %c0_19] : memref<1x8x8x16xbf16, #tpu.memory_space<vmem>>, vector<1x1x8x16xbf16>
    %40 = vector.shape_cast %39 : vector<1x1x8x16xbf16> to vector<8x16xbf16>
    %cst_20 = arith.constant dense<0.000000e+00> : vector<8x256xf32>
    %41 = tpu.matmul %40, %38, %cst_20 {dimension_numbers = #tpu.dot_dimension_numbers<[1], [0], [0], [1], [0, 0, 1, 1], [], []>} : vector<8x16xbf16>, vector<16x256xbf16>, vector<8x256xf32> -> vector<8x256xf32>
    %42 = arith.addf %21, %41 : vector<8x256xf32>
    %c2 = arith.constant 2 : index
    %c0_21 = arith.constant 0 : index
    %43 = vector.load %arg6[%c2, %c0_21] : memref<8x256xf32, #tpu.memory_space<vmem>>, vector<1x256xf32>
    %c15_i32 = arith.constant 15 : i32
    %44 = tpu.dynamic_rotate %0 by %c15_i32 dim 1 : vector<16x256xf32>, i32 -> vector<16x256xf32>
    %45 = vector.broadcast %43 : vector<1x256xf32> to vector<16x256xf32>
    %46 = arith.mulf %44, %45 : vector<16x256xf32>
    %c15_i32_22 = arith.constant 15 : i32
    %47 = tpu.dynamic_rotate %1 by %c15_i32_22 dim 1 : vector<16x256xf32>, i32 -> vector<16x256xf32>
    %48 = vector.broadcast %43 : vector<1x256xf32> to vector<16x256xf32>
    %49 = arith.mulf %47, %48 : vector<16x256xf32>
    %50 = arith.subf %46, %0 : vector<16x256xf32>
    %51 = arith.subf %49, %1 : vector<16x256xf32>
    %52 = arith.mulf %51, %51 : vector<16x256xf32>
    %cst_23 = arith.constant 1.000000e+00 : f32
    %53 = vector.broadcast %cst_23 : f32 to vector<16x256xf32>
    %54 = arith.mulf %52, %53 : vector<16x256xf32>
    %cst_24 = arith.constant 1.000000e+00 : f32
    %55 = vector.broadcast %cst_24 : f32 to vector<16x256xf32>
    %56 = arith.addf %55, %54 : vector<16x256xf32>
    %57 = math.rsqrt %56 : vector<16x256xf32>
    %58 = arith.mulf %50, %57 : vector<16x256xf32>
    %59 = arith.truncf %58 : vector<16x256xf32> to vector<16x256xbf16>
    %c0_25 = arith.constant 0 : index
    %c2_26 = arith.constant 2 : index
    %c0_27 = arith.constant 0 : index
    %c0_28 = arith.constant 0 : index
    %60 = vector.load %arg5[%c0_25, %c2_26, %c0_27, %c0_28] : memref<1x8x8x16xbf16, #tpu.memory_space<vmem>>, vector<1x1x8x16xbf16>
    %61 = vector.shape_cast %60 : vector<1x1x8x16xbf16> to vector<8x16xbf16>
    %cst_29 = arith.constant dense<0.000000e+00> : vector<8x256xf32>
    %62 = tpu.matmul %61, %59, %cst_29 {dimension_numbers = #tpu.dot_dimension_numbers<[1], [0], [0], [1], [0, 0, 1, 1], [], []>} : vector<8x16xbf16>, vector<16x256xbf16>, vector<8x256xf32> -> vector<8x256xf32>
    %63 = arith.addf %42, %62 : vector<8x256xf32>
    %c3 = arith.constant 3 : index
    %c0_30 = arith.constant 0 : index
    %64 = vector.load %arg6[%c3, %c0_30] : memref<8x256xf32, #tpu.memory_space<vmem>>, vector<1x256xf32>
    %c1_i32 = arith.constant 1 : i32
    %65 = tpu.dynamic_rotate %0 by %c1_i32 dim 1 : vector<16x256xf32>, i32 -> vector<16x256xf32>
    %66 = vector.broadcast %64 : vector<1x256xf32> to vector<16x256xf32>
    %67 = arith.mulf %65, %66 : vector<16x256xf32>
    %c1_i32_31 = arith.constant 1 : i32
    %68 = tpu.dynamic_rotate %1 by %c1_i32_31 dim 1 : vector<16x256xf32>, i32 -> vector<16x256xf32>
    %69 = vector.broadcast %64 : vector<1x256xf32> to vector<16x256xf32>
    %70 = arith.mulf %68, %69 : vector<16x256xf32>
    %71 = arith.subf %67, %0 : vector<16x256xf32>
    %72 = arith.subf %70, %1 : vector<16x256xf32>
    %73 = arith.mulf %72, %72 : vector<16x256xf32>
    %cst_32 = arith.constant 1.000000e+00 : f32
    %74 = vector.broadcast %cst_32 : f32 to vector<16x256xf32>
    %75 = arith.mulf %73, %74 : vector<16x256xf32>
    %cst_33 = arith.constant 1.000000e+00 : f32
    %76 = vector.broadcast %cst_33 : f32 to vector<16x256xf32>
    %77 = arith.addf %76, %75 : vector<16x256xf32>
    %78 = math.rsqrt %77 : vector<16x256xf32>
    %79 = arith.mulf %71, %78 : vector<16x256xf32>
    %80 = arith.truncf %79 : vector<16x256xf32> to vector<16x256xbf16>
    %c0_34 = arith.constant 0 : index
    %c3_35 = arith.constant 3 : index
    %c0_36 = arith.constant 0 : index
    %c0_37 = arith.constant 0 : index
    %81 = vector.load %arg5[%c0_34, %c3_35, %c0_36, %c0_37] : memref<1x8x8x16xbf16, #tpu.memory_space<vmem>>, vector<1x1x8x16xbf16>
    %82 = vector.shape_cast %81 : vector<1x1x8x16xbf16> to vector<8x16xbf16>
    %cst_38 = arith.constant dense<0.000000e+00> : vector<8x256xf32>
    %83 = tpu.matmul %82, %80, %cst_38 {dimension_numbers = #tpu.dot_dimension_numbers<[1], [0], [0], [1], [0, 0, 1, 1], [], []>} : vector<8x16xbf16>, vector<16x256xbf16>, vector<8x256xf32> -> vector<8x256xf32>
    %84 = arith.addf %63, %83 : vector<8x256xf32>
    %c4 = arith.constant 4 : index
    %c0_39 = arith.constant 0 : index
    %85 = vector.load %arg6[%c4, %c0_39] : memref<8x256xf32, #tpu.memory_space<vmem>>, vector<1x256xf32>
    %c255_i32 = arith.constant 255 : i32
    %86 = tpu.dynamic_rotate %0 by %c255_i32 dim 1 : vector<16x256xf32>, i32 -> vector<16x256xf32>
    %87 = vector.broadcast %85 : vector<1x256xf32> to vector<16x256xf32>
    %88 = arith.mulf %86, %87 : vector<16x256xf32>
    %c255_i32_40 = arith.constant 255 : i32
    %89 = tpu.dynamic_rotate %1 by %c255_i32_40 dim 1 : vector<16x256xf32>, i32 -> vector<16x256xf32>
    %90 = vector.broadcast %85 : vector<1x256xf32> to vector<16x256xf32>
    %91 = arith.mulf %89, %90 : vector<16x256xf32>
    %92 = arith.subf %88, %0 : vector<16x256xf32>
    %93 = arith.subf %91, %1 : vector<16x256xf32>
    %94 = arith.mulf %93, %93 : vector<16x256xf32>
    %cst_41 = arith.constant 1.000000e+00 : f32
    %95 = vector.broadcast %cst_41 : f32 to vector<16x256xf32>
    %96 = arith.mulf %94, %95 : vector<16x256xf32>
    %cst_42 = arith.constant 1.000000e+00 : f32
    %97 = vector.broadcast %cst_42 : f32 to vector<16x256xf32>
    %98 = arith.addf %97, %96 : vector<16x256xf32>
    %99 = math.rsqrt %98 : vector<16x256xf32>
    %100 = arith.mulf %92, %99 : vector<16x256xf32>
    %101 = arith.truncf %100 : vector<16x256xf32> to vector<16x256xbf16>
    %c0_43 = arith.constant 0 : index
    %c4_44 = arith.constant 4 : index
    %c0_45 = arith.constant 0 : index
    %c0_46 = arith.constant 0 : index
    %102 = vector.load %arg5[%c0_43, %c4_44, %c0_45, %c0_46] : memref<1x8x8x16xbf16, #tpu.memory_space<vmem>>, vector<1x1x8x16xbf16>
    %103 = vector.shape_cast %102 : vector<1x1x8x16xbf16> to vector<8x16xbf16>
    %cst_47 = arith.constant dense<0.000000e+00> : vector<8x256xf32>
    %104 = tpu.matmul %103, %101, %cst_47 {dimension_numbers = #tpu.dot_dimension_numbers<[1], [0], [0], [1], [0, 0, 1, 1], [], []>} : vector<8x16xbf16>, vector<16x256xbf16>, vector<8x256xf32> -> vector<8x256xf32>
    %105 = arith.addf %84, %104 : vector<8x256xf32>
    %c5 = arith.constant 5 : index
    %c0_48 = arith.constant 0 : index
    %106 = vector.load %arg6[%c5, %c0_48] : memref<8x256xf32, #tpu.memory_space<vmem>>, vector<1x256xf32>
    %c241_i32 = arith.constant 241 : i32
    %107 = tpu.dynamic_rotate %0 by %c241_i32 dim 1 : vector<16x256xf32>, i32 -> vector<16x256xf32>
    %108 = vector.broadcast %106 : vector<1x256xf32> to vector<16x256xf32>
    %109 = arith.mulf %107, %108 : vector<16x256xf32>
    %c241_i32_49 = arith.constant 241 : i32
    %110 = tpu.dynamic_rotate %1 by %c241_i32_49 dim 1 : vector<16x256xf32>, i32 -> vector<16x256xf32>
    %111 = vector.broadcast %106 : vector<1x256xf32> to vector<16x256xf32>
    %112 = arith.mulf %110, %111 : vector<16x256xf32>
    %113 = arith.subf %109, %0 : vector<16x256xf32>
    %114 = arith.subf %112, %1 : vector<16x256xf32>
    %115 = arith.mulf %114, %114 : vector<16x256xf32>
    %cst_50 = arith.constant 1.000000e+00 : f32
    %116 = vector.broadcast %cst_50 : f32 to vector<16x256xf32>
    %117 = arith.mulf %115, %116 : vector<16x256xf32>
    %cst_51 = arith.constant 1.000000e+00 : f32
    %118 = vector.broadcast %cst_51 : f32 to vector<16x256xf32>
    %119 = arith.addf %118, %117 : vector<16x256xf32>
    %120 = math.rsqrt %119 : vector<16x256xf32>
    %121 = arith.mulf %113, %120 : vector<16x256xf32>
    %122 = arith.truncf %121 : vector<16x256xf32> to vector<16x256xbf16>
    %c0_52 = arith.constant 0 : index
    %c5_53 = arith.constant 5 : index
    %c0_54 = arith.constant 0 : index
    %c0_55 = arith.constant 0 : index
    %123 = vector.load %arg5[%c0_52, %c5_53, %c0_54, %c0_55] : memref<1x8x8x16xbf16, #tpu.memory_space<vmem>>, vector<1x1x8x16xbf16>
    %124 = vector.shape_cast %123 : vector<1x1x8x16xbf16> to vector<8x16xbf16>
    %cst_56 = arith.constant dense<0.000000e+00> : vector<8x256xf32>
    %125 = tpu.matmul %124, %122, %cst_56 {dimension_numbers = #tpu.dot_dimension_numbers<[1], [0], [0], [1], [0, 0, 1, 1], [], []>} : vector<8x16xbf16>, vector<16x256xbf16>, vector<8x256xf32> -> vector<8x256xf32>
    %126 = arith.addf %105, %125 : vector<8x256xf32>
    %c6 = arith.constant 6 : index
    %c0_57 = arith.constant 0 : index
    %127 = vector.load %arg6[%c6, %c0_57] : memref<8x256xf32, #tpu.memory_space<vmem>>, vector<1x256xf32>
    %c240_i32 = arith.constant 240 : i32
    %128 = tpu.dynamic_rotate %0 by %c240_i32 dim 1 : vector<16x256xf32>, i32 -> vector<16x256xf32>
    %129 = vector.broadcast %127 : vector<1x256xf32> to vector<16x256xf32>
    %130 = arith.mulf %128, %129 : vector<16x256xf32>
    %c240_i32_58 = arith.constant 240 : i32
    %131 = tpu.dynamic_rotate %1 by %c240_i32_58 dim 1 : vector<16x256xf32>, i32 -> vector<16x256xf32>
    %132 = vector.broadcast %127 : vector<1x256xf32> to vector<16x256xf32>
    %133 = arith.mulf %131, %132 : vector<16x256xf32>
    %134 = arith.subf %130, %0 : vector<16x256xf32>
    %135 = arith.subf %133, %1 : vector<16x256xf32>
    %136 = arith.mulf %135, %135 : vector<16x256xf32>
    %cst_59 = arith.constant 1.000000e+00 : f32
    %137 = vector.broadcast %cst_59 : f32 to vector<16x256xf32>
    %138 = arith.mulf %136, %137 : vector<16x256xf32>
    %cst_60 = arith.constant 1.000000e+00 : f32
    %139 = vector.broadcast %cst_60 : f32 to vector<16x256xf32>
    %140 = arith.addf %139, %138 : vector<16x256xf32>
    %141 = math.rsqrt %140 : vector<16x256xf32>
    %142 = arith.mulf %134, %141 : vector<16x256xf32>
    %143 = arith.truncf %142 : vector<16x256xf32> to vector<16x256xbf16>
    %c0_61 = arith.constant 0 : index
    %c6_62 = arith.constant 6 : index
    %c0_63 = arith.constant 0 : index
    %c0_64 = arith.constant 0 : index
    %144 = vector.load %arg5[%c0_61, %c6_62, %c0_63, %c0_64] : memref<1x8x8x16xbf16, #tpu.memory_space<vmem>>, vector<1x1x8x16xbf16>
    %145 = vector.shape_cast %144 : vector<1x1x8x16xbf16> to vector<8x16xbf16>
    %cst_65 = arith.constant dense<0.000000e+00> : vector<8x256xf32>
    %146 = tpu.matmul %145, %143, %cst_65 {dimension_numbers = #tpu.dot_dimension_numbers<[1], [0], [0], [1], [0, 0, 1, 1], [], []>} : vector<8x16xbf16>, vector<16x256xbf16>, vector<8x256xf32> -> vector<8x256xf32>
    %147 = arith.addf %126, %146 : vector<8x256xf32>
    %c7 = arith.constant 7 : index
    %c0_66 = arith.constant 0 : index
    %148 = vector.load %arg6[%c7, %c0_66] : memref<8x256xf32, #tpu.memory_space<vmem>>, vector<1x256xf32>
    %c239_i32 = arith.constant 239 : i32
    %149 = tpu.dynamic_rotate %0 by %c239_i32 dim 1 : vector<16x256xf32>, i32 -> vector<16x256xf32>
    %150 = vector.broadcast %148 : vector<1x256xf32> to vector<16x256xf32>
    %151 = arith.mulf %149, %150 : vector<16x256xf32>
    %c239_i32_67 = arith.constant 239 : i32
    %152 = tpu.dynamic_rotate %1 by %c239_i32_67 dim 1 : vector<16x256xf32>, i32 -> vector<16x256xf32>
    %153 = vector.broadcast %148 : vector<1x256xf32> to vector<16x256xf32>
    %154 = arith.mulf %152, %153 : vector<16x256xf32>
    %155 = arith.subf %151, %0 : vector<16x256xf32>
    %156 = arith.subf %154, %1 : vector<16x256xf32>
    %157 = arith.mulf %156, %156 : vector<16x256xf32>
    %cst_68 = arith.constant 1.000000e+00 : f32
    %158 = vector.broadcast %cst_68 : f32 to vector<16x256xf32>
    %159 = arith.mulf %157, %158 : vector<16x256xf32>
    %cst_69 = arith.constant 1.000000e+00 : f32
    %160 = vector.broadcast %cst_69 : f32 to vector<16x256xf32>
    %161 = arith.addf %160, %159 : vector<16x256xf32>
    %162 = math.rsqrt %161 : vector<16x256xf32>
    %163 = arith.mulf %155, %162 : vector<16x256xf32>
    %164 = arith.truncf %163 : vector<16x256xf32> to vector<16x256xbf16>
    %c0_70 = arith.constant 0 : index
    %c7_71 = arith.constant 7 : index
    %c0_72 = arith.constant 0 : index
    %c0_73 = arith.constant 0 : index
    %165 = vector.load %arg5[%c0_70, %c7_71, %c0_72, %c0_73] : memref<1x8x8x16xbf16, #tpu.memory_space<vmem>>, vector<1x1x8x16xbf16>
    %166 = vector.shape_cast %165 : vector<1x1x8x16xbf16> to vector<8x16xbf16>
    %cst_74 = arith.constant dense<0.000000e+00> : vector<8x256xf32>
    %167 = tpu.matmul %166, %164, %cst_74 {dimension_numbers = #tpu.dot_dimension_numbers<[1], [0], [0], [1], [0, 0, 1, 1], [], []>} : vector<8x16xbf16>, vector<16x256xbf16>, vector<8x256xf32> -> vector<8x256xf32>
    %168 = arith.addf %147, %167 : vector<8x256xf32>
    %c0_75 = arith.constant 0 : index
    %c0_76 = arith.constant 0 : index
    %169 = vector.load %arg7[%c0_75, %c0_76] : memref<8x256xf32, #tpu.memory_space<vmem>>, vector<8x256xf32>
    tpu.vector_store %arg7[%c0_75, %c0_76], %168 {strides = array<i32>} : memref<8x256xf32, #tpu.memory_space<vmem>>, vector<8x256xf32>,
    return
  }
  func.func @transform_0(%arg0: i32, %arg1: i32, %arg2: i32) -> (i32, i32) {
    %c0_i32 = arith.constant 0 : i32
    return %arg2, %arg0 : i32, i32
  }
  func.func @transform_1(%arg0: i32, %arg1: i32, %arg2: i32) -> (i32, i32) {
    %c0_i32 = arith.constant 0 : i32
    return %arg2, %arg0 : i32, i32
  }
  func.func @transform_2(%arg0: i32, %arg1: i32, %arg2: i32) -> (i32, i32, i32, i32) {
    %c0_i32 = arith.constant 0 : i32
    %c0_i32_0 = arith.constant 0 : i32
    %c0_i32_1 = arith.constant 0 : i32
    return %arg2, %c0_i32, %arg1, %c0_i32_0 : i32, i32, i32, i32
  }
  func.func @transform_3(%arg0: i32, %arg1: i32, %arg2: i32) -> (i32, i32) {
    %c0_i32 = arith.constant 0 : i32
    %c0_i32_0 = arith.constant 0 : i32
    %c0_i32_1 = arith.constant 0 : i32
    return %c0_i32, %c0_i32_0 : i32, i32
  }
  func.func @transform_4(%arg0: i32, %arg1: i32, %arg2: i32) -> (i32, i32) {
    %c0_i32 = arith.constant 0 : i32
    return %arg1, %arg0 : i32, i32
  }
}

</mosaic_0001>

<llo_original>
// kernel: tpu_custom_call.1
$region0: #{tpu_custom_call.1}
  #allocation0 [shape = 'u32[]', space=smem, size = 0x4, offset = 0x4, fixed_abs, tag = 'smem constant byte address 0x4 - core index']
  #allocation1 [shape = 'u32[72,128]{1,0:T(1,128)}', space=vmem, size = 0x9000, scoped, tag = 'internal scratch']
  %s0 = inlined_call_operand.hbm [shape: f32[16,512], index: 0, kind: input, shape index: {}]
  %s1 = inlined_call_operand.hbm [shape: f32[16,512], index: 1, kind: input, shape index: {}]
  %s2 = inlined_call_operand.hbm [shape: bf16[1,8,8,16], index: 2, kind: input, shape index: {}]
  %s3 = inlined_call_operand.hbm [shape: f32[8,256], index: 3, kind: input, shape index: {}]
  %s4 = inlined_call_operand.hbm [shape: f32[8,512], index: 4, kind: output, shape index: {}]
  %s5 = sld [smem:[#allocation0]]
  $region65: #{tpu_custom_call.1} parent=0
    _
  %s7 = ssub.s32 1, %s5
  %s8 = scalar_select 0, %s7, %s5
  $region1: #{tpu_custom_call.1} parent=0
    #allocation2 [shape = 'u8[32768]{0}', space=vmem, size = 0x8000, scoped, tag = 'input window, operand 0']
    #allocation3 [shape = 's32[2]{0}', space=sflag, size = 0x8, scoped, tag = 'scoped memory for tpu_custom_call.1']
    #allocation4 [shape = 's32[2]{0}', space=sflag, size = 0x8, scoped, tag = 'scoped memory for tpu_custom_call.1']
    #allocation5 [shape = 'u8[32768]{0}', space=vmem, size = 0x8000, scoped, tag = 'input window, operand 1']
    #allocation6 [shape = 's32[2]{0}', space=sflag, size = 0x8, scoped, tag = 'scoped memory for tpu_custom_call.1']
    #allocation7 [shape = 'u8[16384]{0}', space=vmem, size = 0x4000, scoped, tag = 'input window, operand 2, single buffered']
    #allocation8 [shape = 'u8[8192]{0}', space=vmem, size = 0x2000, scoped, tag = 'input window, operand 3, single buffered']
    #allocation9 [shape = 's32[1]{0}', space=sflag, size = 0x4, scoped, tag = 'scoped memory for tpu_custom_call.1']
    #allocation10 [shape = 'u8[16384]{0}', space=vmem, size = 0x4000, scoped, tag = 'output window, operand 0']
    %9 = vsyncpa [#allocation3], 0
    %s10 = scalar_lea.sflag [#allocation3], 1
    %11 = vsyncpa %s10, 0
    %12 = vsyncpa [#allocation6], 0
    %s13 = scalar_lea.sflag [#allocation6], 1
    %14 = vsyncpa %s13, 0
    %15 = vsyncpa [#allocation9], 0
    %16 = vsyncpa [#allocation4], 0
    %s17 = scalar_lea.sflag [#allocation4], 1
    %18 = vsyncpa %s17, 0
    loop: start=0, step=1, limit=4
    $region2: #{tpu_custom_call.1} parent=1 // loop_pre_header
      _
    $region3: #{tpu_custom_call.1} parent=1 // loop_header
      %s20 = sphi 0, %s24
      %p21 = scmp.ge.s32.totalorder %s20, 4
      %s27 = sphi 0, %s46
      %s28 = sphi 0, %s42
      %s29 = sphi 0, %s38
      %s30 = sphi 0, %s27
      %s31 = sphi 0, %s28
      %s32 = sphi 0, %s29
      %s33 = sphi 0, %s30
      %s34 = sphi 0, %s31
      %s35 = sphi 0, %s32
      %s51 = sphi 0, %s53
      %s54 = sphi 0, %s51
      %s55 = sphi 0, %s54
      %s71 = sphi 0, %s55
      %s79 = sphi 0, %s81
      %s82 = sphi 0, %s79
      %s83 = sphi 0, %s82
      %s99 = sphi 0, %s83
      %s107 = sphi 0, %s109
      %s110 = sphi 0, %s107
      %s111 = sphi 0, %s110
      %s127 = sphi 0, %s111
      %s131 = sphi 0, %s131
      %s133 = sphi 0, %s131
      %s134 = sphi 0, %s133
      %s148 = sphi 0, %s134
      %s156 = sphi 0, %s158
      %s159 = sphi 0, %s156
      %s160 = sphi 0, %s159
      %s176 = sphi 0, %s160
    $region4: #{tpu_custom_call.1} parent=1 // loop_header_branch
      %23 = sbr.rel (%p21) target = $region8
    $region5: #{tpu_custom_call.1} parent=1 // loop_body
      %s25 = ssub.s32 %s20, 1
      %s26 = ssub.s32 %s20, 2
      %s36 = sadd.s32 1, %s29
      %p37 = scmp.ge.s32.totalorder %s36, 1
      %s38 = scalar_select %p37, 0, %s36
      %s39 = sadd.s32 1, %s28
      %s40 = scalar_select %p37, %s39, %s28
      %p41 = scmp.ge.s32.totalorder %s40, 1
      %s42 = scalar_select %p41, 0, %s40
      %s43 = sadd.s32 1, %s27
      %s44 = scalar_select %p41, %s43, %s27
      %p45 = scmp.ge.s32.totalorder %s44, 2
      %s46 = scalar_select %p45, 0, %s44
      %s47 = ssub.s32 %s29, %s38
      %s48 = ssub.s32 %s27, %s46
      %s49 = sor.u32 %s47, %s48
      %p50 = scmp.eq.s32.totalorder %s49, 0
      %s52 = sadd.s32 %s51, 1
      %s53 = scalar_select %p50, %s51, %s52
      %p56 = pneg %p50
      %p57 = scmp.eq.s32.totalorder %s20, 1
      %p58 = por %p56, %p57
      %p59 = scmp.ne.s32.totalorder %s51, %s54
      %p60 = scmp.eq.s32.totalorder %s20, 0
      %p61 = por %p59, %p60
      %p62 = scmp.ne.s32.totalorder %s51, %s54
      %p63 = scmp.eq.s32.totalorder %s25, 1
      %p64 = por %p62, %p63
      %p65 = scmp.ne.s32.totalorder %s54, %s55
      %p66 = scmp.eq.s32.totalorder %s25, 0
      %p67 = por %p65, %p66
      %p68 = scmp.ne.s32.totalorder %s54, %s55
      %p69 = scmp.eq.s32.totalorder %s26, 1
      %p70 = por %p68, %p69
      %p72 = scmp.ne.s32.totalorder %s55, %s71
      %p73 = scmp.eq.s32.totalorder %s26, 0
      %p74 = por %p72, %p73
      %s75 = ssub.s32 %s29, %s38
      %s76 = ssub.s32 %s27, %s46
      %s77 = sor.u32 %s75, %s76
      %p78 = scmp.eq.s32.totalorder %s77, 0
      %s80 = sadd.s32 %s79, 1
      %s81 = scalar_select %p78, %s79, %s80
      %p84 = pneg %p78
      %p85 = scmp.eq.s32.totalorder %s20, 1
      %p86 = por %p84, %p85
      %p87 = scmp.ne.s32.totalorder %s79, %s82
      %p88 = scmp.eq.s32.totalorder %s20, 0
      %p89 = por %p87, %p88
      %p90 = scmp.ne.s32.totalorder %s79, %s82
      %p91 = scmp.eq.s32.totalorder %s25, 1
      %p92 = por %p90, %p91
      %p93 = scmp.ne.s32.totalorder %s82, %s83
      %p94 = scmp.eq.s32.totalorder %s25, 0
      %p95 = por %p93, %p94
      %p96 = scmp.ne.s32.totalorder %s82, %s83
      %p97 = scmp.eq.s32.totalorder %s26, 1
      %p98 = por %p96, %p97
      %p100 = scmp.ne.s32.totalorder %s83, %s99
      %p101 = scmp.eq.s32.totalorder %s26, 0
      %p102 = por %p100, %p101
      %s103 = ssub.s32 %s29, %s38
      %s104 = ssub.s32 %s28, %s42
      %s105 = sor.u32 %s103, %s104
      %p106 = scmp.eq.s32.totalorder %s105, 0
      %s108 = sadd.s32 %s107, 1
      %s109 = scalar_select %p106, %s107, %s108
      %p112 = pneg %p106
      %p113 = scmp.eq.s32.totalorder %s20, 1
      %p114 = por %p112, %p113
      %p115 = scmp.ne.s32.totalorder %s107, %s110
      %p116 = scmp.eq.s32.totalorder %s20, 0
      %p117 = por %p115, %p116
      %p118 = scmp.ne.s32.totalorder %s107, %s110
      %p119 = scmp.eq.s32.totalorder %s25, 1
      %p120 = por %p118, %p119
      %p121 = scmp.ne.s32.totalorder %s110, %s111
      %p122 = scmp.eq.s32.totalorder %s25, 0
      %p123 = por %p121, %p122
      %p124 = scmp.ne.s32.totalorder %s110, %s111
      %p125 = scmp.eq.s32.totalorder %s26, 1
      %p126 = por %p124, %p125
      %p128 = scmp.ne.s32.totalorder %s111, %s127
      %p129 = scmp.eq.s32.totalorder %s26, 0
      %p130 = por %p128, %p129
      %s132 = sadd.s32 %s131, 1
      %p135 = scmp.eq.s32.totalorder %s20, 1
      %p136 = scmp.ne.s32.totalorder %s131, %s133
      %p137 = scmp.eq.s32.totalorder %s20, 0
      %p138 = por %p136, %p137
      %p139 = scmp.ne.s32.totalorder %s131, %s133
      %p140 = scmp.eq.s32.totalorder %s25, 1
      %p141 = por %p139, %p140
      %p142 = scmp.ne.s32.totalorder %s133, %s134
      %p143 = scmp.eq.s32.totalorder %s25, 0
      %p144 = por %p142, %p143
      %p145 = scmp.ne.s32.totalorder %s133, %s134
      %p146 = scmp.eq.s32.totalorder %s26, 1
      %p147 = por %p145, %p146
      %p149 = scmp.ne.s32.totalorder %s134, %s148
      %p150 = scmp.eq.s32.totalorder %s26, 0
      %p151 = por %p149, %p150
      %s152 = ssub.s32 %s28, %s42
      %s153 = ssub.s32 %s27, %s46
      %s154 = sor.u32 %s152, %s153
      %p155 = scmp.eq.s32.totalorder %s154, 0
      %s157 = sadd.s32 %s156, 1
      %s158 = scalar_select %p155, %s156, %s157
      %p161 = pneg %p155
      %p162 = scmp.eq.s32.totalorder %s20, 1
      %p163 = por %p161, %p162
      %p164 = scmp.ne.s32.totalorder %s156, %s159
      %p165 = scmp.eq.s32.totalorder %s20, 0
      %p166 = por %p164, %p165
      %p167 = scmp.ne.s32.totalorder %s156, %s159
      %p168 = scmp.eq.s32.totalorder %s25, 1
      %p169 = por %p167, %p168
      %p170 = scmp.ne.s32.totalorder %s159, %s160
      %p171 = scmp.eq.s32.totalorder %s25, 0
      %p172 = por %p170, %p171
      %p173 = scmp.ne.s32.totalorder %s159, %s160
      %p174 = scmp.eq.s32.totalorder %s26, 1
      %p175 = por %p173, %p174
      %p177 = scmp.ne.s32.totalorder %s160, %s176
      %p178 = scmp.eq.s32.totalorder %s26, 0
      %p179 = por %p177, %p178
      %p180 = scmp.le.s32.totalorder 1, %s20
      %p181 = scmp.lt.s32.totalorder %s20, 3
      %p182 = pnand %p180, %p181
      %p183 = pneg %p182
      // Predicated region
      $region9: #{tpu_custom_call.1} parent=5 // pred_check
        _
      $region10: #{tpu_custom_call.1} parent=5 // pred_check_branch
        %185 = sbr.rel (%p182) target = $region12
      $region11: #{tpu_custom_call.1} parent=5 // pred_region
        %s186 = ssub.s32 %s20, 1
        // Predicated region
        $region13: #{tpu_custom_call.1} parent=11 // pred_check
          %p187 = pneg %p123
        $region14: #{tpu_custom_call.1} parent=11 // pred_check_branch
          %189 = sbr.rel (%p187) target = $region16
        $region15: #{tpu_custom_call.1} parent=11 // pred_region
          %191 = vsyncadd [#allocation6], 0
          %s192 = smul.addr %s32, 8
          %s193 = sadd.s32 %s31, %s192
          %s194 = smul.addr %s193, 4
          %s195 = scalar_lea.hbm %s2, %s194
          %s196 = sshll.u32 %s195, 4
          %s197 = int_to_ptr.hbm [resolvable:$true] %s196
          %s198 = sshll.u32 [#allocation7], 4
          %s199 = int_to_ptr.vmem [resolvable:$true] %s198
          %204 = dma.hbm_to_vmem [thread:$0]  %s197, 512, %s199, [#allocation6], 64, 64, 4
        $region16: #{tpu_custom_call.1} parent=11 // pred_fallthru
          _
        // Predicated region
        $region17: #{tpu_custom_call.1} parent=11 // pred_check
          %p205 = pneg %p144
        $region18: #{tpu_custom_call.1} parent=11 // pred_check_branch
          %207 = sbr.rel (%p205) target = $region20
        $region19: #{tpu_custom_call.1} parent=11 // pred_region
          %209 = vsyncadd [#allocation9], 0
          %s211 = sshll.u32 %s3, 4
          %s212 = int_to_ptr.hbm [resolvable:$true] %s211
          %s213 = sshll.u32 [#allocation8], 4
          %s214 = int_to_ptr.vmem [resolvable:$true] %s213
          %216 = dma.hbm_to_vmem [thread:$0]  %s212, 256, %s214, [#allocation9]
        $region20: #{tpu_custom_call.1} parent=11 // pred_fallthru
          _
      $region12: #{tpu_custom_call.1} parent=5 // pred_fallthru
        _
      %p217 = scmp.lt.s32.totalorder %s20, 2
      // Predicated region
      $region21: #{tpu_custom_call.1} parent=5 // pred_check
        %p218 = pneg %p217
      $region22: #{tpu_custom_call.1} parent=5 // pred_check_branch
        %220 = sbr.rel (%p218) target = $region24
      $region23: #{tpu_custom_call.1} parent=5 // pred_region
        // Predicated region
        $region25: #{tpu_custom_call.1} parent=23 // pred_check
          %p221 = pneg %p61
        $region26: #{tpu_custom_call.1} parent=23 // pred_check_branch
          %223 = sbr.rel (%p221) target = $region28
        $region27: #{tpu_custom_call.1} parent=23 // pred_region
          %s224 = sand.u32 %s51, 1
          %s225 = scalar_lea.sflag [#allocation3], %s224
          %s226 = sand.u32 %s51, 1
          %s227 = smul.addr %s226, 32
          %s228 = scalar_lea.vmem [#allocation2], %s227
          %s229 = smul.u32 2, %s29
          %s230 = smul.u32 2, %s27
          %232 = vsyncadd %s225, 0
          %s233 = smul.addr %s229, 4
          %s234 = sadd.s32 %s230, %s233
          %s235 = smul.addr %s234, 8
          %s236 = scalar_lea.hbm %s0, %s235
          %s237 = sshll.u32 %s236, 4
          %s238 = int_to_ptr.hbm [resolvable:$true] %s237
          %s239 = sshll.u32 %s228, 4
          %s240 = int_to_ptr.vmem [resolvable:$true] %s239
          %245 = dma.hbm_to_vmem [thread:$0]  %s238, 512, %s240, %s225, 512, 256, 16
        $region28: #{tpu_custom_call.1} parent=23 // pred_fallthru
          _
        // Predicated region
        $region29: #{tpu_custom_call.1} parent=23 // pred_check
          %p246 = pneg %p89
        $region30: #{tpu_custom_call.1} parent=23 // pred_check_branch
          %248 = sbr.rel (%p246) target = $region32
        $region31: #{tpu_custom_call.1} parent=23 // pred_region
          %s249 = sand.u32 %s20, 1
          %s250 = scalar_lea.sflag [#allocation6], %s249
          %s251 = sand.u32 %s79, 1
          %s252 = smul.addr %s251, 32
          %s253 = scalar_lea.vmem [#allocation5], %s252
          %s254 = smul.u32 2, %s29
          %s255 = smul.u32 2, %s27
          %257 = vsyncadd %s250, 0
          %s258 = smul.addr %s254, 4
          %s259 = sadd.s32 %s255, %s258
          %s260 = smul.addr %s259, 8
          %s261 = scalar_lea.hbm %s1, %s260
          %s262 = sshll.u32 %s261, 4
          %s263 = int_to_ptr.hbm [resolvable:$true] %s262
          %s264 = sshll.u32 %s253, 4
          %s265 = int_to_ptr.vmem [resolvable:$true] %s264
          %270 = dma.hbm_to_vmem [thread:$0]  %s263, 512, %s265, %s250, 512, 256, 16
        $region32: #{tpu_custom_call.1} parent=23 // pred_fallthru
          _
      $region24: #{tpu_custom_call.1} parent=5 // pred_fallthru
        _
      %p271 = scmp.le.s32.totalorder 1, %s20
      %p272 = scmp.lt.s32.totalorder %s20, 3
      %p273 = pnand %p271, %p272
      %p274 = pneg %p273
      // Predicated region
      $region33: #{tpu_custom_call.1} parent=5 // pred_check
        _
      $region34: #{tpu_custom_call.1} parent=5 // pred_check_branch
        %276 = sbr.rel (%p273) target = $region36
      $region35: #{tpu_custom_call.1} parent=5 // pred_region
        %s277 = ssub.s32 %s20, 1
        %s278 = sand.u32 %s54, 1
        %s279 = scalar_lea.sflag [#allocation3], %s278
        %s280 = sand.u32 %s54, 1
        %s281 = smul.addr %s280, 32
        %s282 = scalar_lea.vmem [#allocation2], %s281
        // Predicated region
        $region37: #{tpu_custom_call.1} parent=35 // pred_check
          %p283 = pneg %p67
        $region38: #{tpu_custom_call.1} parent=35 // pred_check_branch
          %285 = sbr.rel (%p283) target = $region40
        $region39: #{tpu_custom_call.1} parent=35 // pred_region
          %287 = dma.done %s279, 512
        $region40: #{tpu_custom_call.1} parent=35 // pred_fallthru
          _
        %s288 = sand.u32 %s25, 1
        %s289 = scalar_lea.sflag [#allocation6], %s288
        %s290 = sand.u32 %s82, 1
        %s291 = smul.addr %s290, 32
        %s292 = scalar_lea.vmem [#allocation5], %s291
        // Predicated region
        $region41: #{tpu_custom_call.1} parent=35 // pred_check
          %p293 = pneg %p95
        $region42: #{tpu_custom_call.1} parent=35 // pred_check_branch
          %295 = sbr.rel (%p293) target = $region44
        $region43: #{tpu_custom_call.1} parent=35 // pred_region
          %297 = dma.done %s289, 512
        $region44: #{tpu_custom_call.1} parent=35 // pred_fallthru
          _
        // Predicated region
        $region45: #{tpu_custom_call.1} parent=35 // pred_check
          %p298 = pneg %p123
        $region46: #{tpu_custom_call.1} parent=35 // pred_check_branch
          %300 = sbr.rel (%p298) target = $region48
        $region47: #{tpu_custom_call.1} parent=35 // pred_region
          %302 = dma.done [#allocation6], 512
        $region48: #{tpu_custom_call.1} parent=35 // pred_fallthru
          _
        // Predicated region
        $region49: #{tpu_custom_call.1} parent=35 // pred_check
          %p303 = pneg %p144
        $region50: #{tpu_custom_call.1} parent=35 // pred_check_branch
          %305 = sbr.rel (%p303) target = $region52
        $region51: #{tpu_custom_call.1} parent=35 // pred_region
          %307 = dma.done [#allocation9], 256
        $region52: #{tpu_custom_call.1} parent=35 // pred_fallthru
          _
        %s308 = sand.u32 %s54, 1
        %s309 = scalar_lea.sflag [#allocation3], %s308
        %s310 = sand.u32 %s54, 1
        %s311 = smul.addr %s310, 32
        %s312 = scalar_lea.vmem [#allocation2], %s311
        %p313 = pneg %p67
        %p314 = pneg %p64
        %s315 = sand.u32 %s25, 1
        %s316 = scalar_lea.sflag [#allocation6], %s315
        %s317 = sand.u32 %s82, 1
        %s318 = smul.addr %s317, 32
        %s319 = scalar_lea.vmem [#allocation5], %s318
        %p320 = pneg %p95
        %p321 = pneg %p92
        %p322 = pneg %p123
        %p323 = pneg %p120
        %p324 = pneg %p144
        %p325 = pneg %p141
        %p326 = pneg %p172
        %p327 = pneg %p169
        %s328 = sand.u32 %s159, 1
        %s329 = scalar_lea.sflag [#allocation4], %s328
        %s330 = sand.u32 %s159, 1
        %s331 = smul.addr %s330, 16
        %s332 = scalar_lea.vmem [#allocation10], %s331
        %s333 = smul.u32 2, %s32
        %s334 = smul.u32 2, %s30
        %s335 = smul.u32 2, %s32
        %s336 = smul.u32 2, %s30
        %s337 = smul.u32 2, %s30
        %v339 = vld [vmem:[%s282] sm:$0xff]
        %v340 = vld [vmem:[%s282 + $0x8] sm:$0xff]
        %v341 = vld [vmem:[%s282 + $0x10] sm:$0xff]
        %v342 = vld [vmem:[%s282 + $0x18] sm:$0xff]
        %v343 = vld [vmem:[%s292] sm:$0xff]
        %v344 = vld [vmem:[%s292 + $0x8] sm:$0xff]
        %v345 = vld [vmem:[%s292 + $0x10] sm:$0xff]
        %v346 = vld [vmem:[%s292 + $0x18] sm:$0xff]
        %v347 = vld [vmem:[#allocation8] ss:$8 sm:$0x3]
        %348 = vrot.lane.b32.xlu0 %v339, 17
        %v349 = vpop.permute.xlu0 %348
        %350 = vrot.lane.b32.xlu0 %v341, 17
        %v351 = vpop.permute.xlu0 %350
        %352 = vrot.lane.b32.xlu0 %v340, 17
        %v353 = vpop.permute.xlu0 %352
        %354 = vrot.lane.b32.xlu0 %v342, 17
        %v355 = vpop.permute.xlu0 %354
        %v356 = vlaneseq
        %v357 = vand.u32 %v356, 127
        %vm358 = vcmp.lt.s32.totalorder %v357, 17
        %v359 = vsel %vm358, %v349, %v353
        %v360 = vsel %vm358, %v351, %v355
        %v361 = vsel %vm358, %v353, %v349
        %v362 = vsel %vm358, %v355, %v351
        %v364 = vperm.slane %v347, 0
        %v365 = vperm.slane %v347, 1
        %v368 = vmul.f32 %v361, %v364
        %v369 = vmul.f32 %v359, %v365
        %v370 = vmul.f32 %v362, %v364
        %v371 = vmul.f32 %v360, %v365
        %372 = vrot.lane.b32.xlu0 %v343, 17
        %v373 = vpop.permute.xlu0 %372
        %374 = vrot.lane.b32.xlu0 %v345, 17
        %v375 = vpop.permute.xlu0 %374
        %376 = vrot.lane.b32.xlu0 %v344, 17
        %v377 = vpop.permute.xlu0 %376
        %378 = vrot.lane.b32.xlu0 %v346, 17
        %v379 = vpop.permute.xlu0 %378
        %v380 = vsel %vm358, %v373, %v377
        %v381 = vsel %vm358, %v375, %v379
        %v382 = vsel %vm358, %v377, %v373
        %v383 = vsel %vm358, %v379, %v375
        %v384 = vmul.f32 %v382, %v364
        %v385 = vmul.f32 %v380, %v365
        %v386 = vmul.f32 %v383, %v364
        %v387 = vmul.f32 %v381, %v365
        %v388 = vsub.f32 %v368, %v339
        %v389 = vsub.f32 %v369, %v340
        %v390 = vsub.f32 %v370, %v341
        %v391 = vsub.f32 %v371, %v342
        %v392 = vsub.f32 %v384, %v343
        %v393 = vsub.f32 %v385, %v344
        %v394 = vsub.f32 %v386, %v345
        %v395 = vsub.f32 %v387, %v346
        %v396 = vmul.f32 %v392, %v392
        %v397 = vmul.f32 %v393, %v393
        %v398 = vmul.f32 %v394, %v394
        %v399 = vmul.f32 %v395, %v395
        %v400 = vadd.f32 %v396, 1.0
        %v401 = vadd.f32 %v397, 1.0
        %v402 = vadd.f32 %v398, 1.0
        %v403 = vadd.f32 %v399, 1.0
        %v404 = vrsqrt.pop %v400
        %v405 = vmul.f32 %v404, %v400
        %v406 = vmul.f32 %v405, %v404
        %v407 = vmul.f32 0.5, %v406
        %v408 = vsub.f32 1.5, %v407
        %v409 = vmul.f32 %v404, %v408
        %vm410 = vweird.f32 %v400
        %vm411 = vweird.f32 %v404
        %vm412 = vmor %vm410, %vm411
        %v413 = vsel %vm412, %v404, %v409
        %v414 = vrsqrt.pop %v401
        %v415 = vmul.f32 %v414, %v401
        %v416 = vmul.f32 %v415, %v414
        %v417 = vmul.f32 0.5, %v416
        %v418 = vsub.f32 1.5, %v417
        %v419 = vmul.f32 %v414, %v418
        %vm420 = vweird.f32 %v401
        %vm421 = vweird.f32 %v414
        %vm422 = vmor %vm420, %vm421
        %v423 = vsel %vm422, %v414, %v419
        %v424 = vrsqrt.pop %v402
        %v425 = vmul.f32 %v424, %v402
        %v426 = vmul.f32 %v425, %v424
        %v427 = vmul.f32 0.5, %v426
        %v428 = vsub.f32 1.5, %v427
        %v429 = vmul.f32 %v424, %v428
        %vm430 = vweird.f32 %v402
        %vm431 = vweird.f32 %v424
        %vm432 = vmor %vm430, %vm431
        %v433 = vsel %vm432, %v424, %v429
        %v434 = vrsqrt.pop %v403
        %v435 = vmul.f32 %v434, %v403
        %v436 = vmul.f32 %v435, %v434
        %v437 = vmul.f32 0.5, %v436
        %v438 = vsub.f32 1.5, %v437
        %v439 = vmul.f32 %v434, %v438
        %vm440 = vweird.f32 %v403
        %vm441 = vweird.f32 %v434
        %vm442 = vmor %vm440, %vm441
        %v443 = vsel %vm442, %v434, %v439
        %v444 = vmul.f32 %v388, %v413
        %v445 = vmul.f32 %v389, %v423
        %v446 = vmul.f32 %v390, %v433
        %v447 = vmul.f32 %v391, %v443
        %v448 = vpack.c.bf16 %v446, %v444
        %v449 = vpack.c.bf16 %v447, %v445
        %v450 = vld [vmem:[#allocation7] sm:$0xf]
        %s451 = scalar_lea.vmem [#allocation8], 1
        %v452 = vld [vmem:[%s451] ss:$8 sm:$0x3]
        %453 = vrot.lane.b32.xlu0 %v339, 16
        %v454 = vpop.permute.xlu0 %453
        %455 = vrot.lane.b32.xlu0 %v341, 16
        %v456 = vpop.permute.xlu0 %455
        %457 = vrot.lane.b32.xlu0 %v340, 16
        %v458 = vpop.permute.xlu0 %457
        %459 = vrot.lane.b32.xlu0 %v342, 16
        %v460 = vpop.permute.xlu0 %459
        %vm461 = vcmp.lt.s32.totalorder %v357, 16
        %v462 = vsel %vm461, %v454, %v458
        %v463 = vsel %vm461, %v456, %v460
        %v464 = vsel %vm461, %v458, %v454
        %v465 = vsel %vm461, %v460, %v456
        %v467 = vperm.slane %v452, 0
        %v468 = vperm.slane %v452, 1
        %v471 = vmul.f32 %v464, %v467
        %v472 = vmul.f32 %v462, %v468
        %v473 = vmul.f32 %v465, %v467
        %v474 = vmul.f32 %v463, %v468
        %475 = vrot.lane.b32.xlu0 %v343, 16
        %v476 = vpop.permute.xlu0 %475
        %477 = vrot.lane.b32.xlu0 %v345, 16
        %v478 = vpop.permute.xlu0 %477
        %479 = vrot.lane.b32.xlu0 %v344, 16
        %v480 = vpop.permute.xlu0 %479
        %481 = vrot.lane.b32.xlu0 %v346, 16
        %v482 = vpop.permute.xlu0 %481
        %v483 = vsel %vm461, %v476, %v480
        %v484 = vsel %vm461, %v478, %v482
        %v485 = vsel %vm461, %v480, %v476
        %v486 = vsel %vm461, %v482, %v478
        %v487 = vmul.f32 %v485, %v467
        %v488 = vmul.f32 %v483, %v468
        %v489 = vmul.f32 %v486, %v467
        %v490 = vmul.f32 %v484, %v468
        %v491 = vsub.f32 %v471, %v339
        %v492 = vsub.f32 %v472, %v340
        %v493 = vsub.f32 %v473, %v341
        %v494 = vsub.f32 %v474, %v342
        %v495 = vsub.f32 %v487, %v343
        %v496 = vsub.f32 %v488, %v344
        %v497 = vsub.f32 %v489, %v345
        %v498 = vsub.f32 %v490, %v346
        %v499 = vmul.f32 %v495, %v495
        %v500 = vmul.f32 %v496, %v496
        %v501 = vmul.f32 %v497, %v497
        %v502 = vmul.f32 %v498, %v498
        %v503 = vadd.f32 %v499, 1.0
        %v504 = vadd.f32 %v500, 1.0
        %v505 = vadd.f32 %v501, 1.0
        %v506 = vadd.f32 %v502, 1.0
        %v507 = vrsqrt.pop %v503
        %v508 = vmul.f32 %v507, %v503
        %v509 = vmul.f32 %v508, %v507
        %v510 = vmul.f32 0.5, %v509
        %v511 = vsub.f32 1.5, %v510
        %v512 = vmul.f32 %v507, %v511
        %vm513 = vweird.f32 %v503
        %vm514 = vweird.f32 %v507
        %vm515 = vmor %vm513, %vm514
        %v516 = vsel %vm515, %v507, %v512
        %v517 = vrsqrt.pop %v504
        %v518 = vmul.f32 %v517, %v504
        %v519 = vmul.f32 %v518, %v517
        %v520 = vmul.f32 0.5, %v519
        %v521 = vsub.f32 1.5, %v520
        %v522 = vmul.f32 %v517, %v521
        %vm523 = vweird.f32 %v504
        %vm524 = vweird.f32 %v517
        %vm525 = vmor %vm523, %vm524
        %v526 = vsel %vm525, %v517, %v522
        %v527 = vrsqrt.pop %v505
        %v528 = vmul.f32 %v527, %v505
        %v529 = vmul.f32 %v528, %v527
        %v530 = vmul.f32 0.5, %v529
        %v531 = vsub.f32 1.5, %v530
        %v532 = vmul.f32 %v527, %v531
        %vm533 = vweird.f32 %v505
        %vm534 = vweird.f32 %v527
        %vm535 = vmor %vm533, %vm534
        %v536 = vsel %vm535, %v527, %v532
        %v537 = vrsqrt.pop %v506
        %v538 = vmul.f32 %v537, %v506
        %v539 = vmul.f32 %v538, %v537
        %v540 = vmul.f32 0.5, %v539
        %v541 = vsub.f32 1.5, %v540
        %v542 = vmul.f32 %v537, %v541
        %vm543 = vweird.f32 %v506
        %vm544 = vweird.f32 %v537
        %vm545 = vmor %vm543, %vm544
        %v546 = vsel %vm545, %v537, %v542
        %v547 = vmul.f32 %v491, %v516
        %v548 = vmul.f32 %v492, %v526
        %v549 = vmul.f32 %v493, %v536
        %v550 = vmul.f32 %v494, %v546
        %v551 = vpack.c.bf16 %v549, %v547
        %v552 = vpack.c.bf16 %v550, %v548
        %s553 = scalar_lea.vmem [#allocation7], 4
        %v554 = vld [vmem:[%s553] sm:$0xf]
        %vm555 = vcmask 130048
        %v557 = vsel %vm555, %v554, 0
        %559 = vmatpush.bf16.msra.mxu0 0
        %560 = vmatpush.bf16.msra.mxu0 0
        %561 = vmatpush.bf16.msra.mxu0 0
        %562 = vmatpush.bf16.msra.mxu0 0
        %563 = vmatpush.bf16.msra.mxu0 0
        %564 = vmatpush.bf16.msra.mxu0 0
        %565 = vmatpush.bf16.msra.mxu0 0
        %566 = vmatpush.bf16.msra.mxu0 %v551
        %567 = vmatmul.bf16.gmra.mxu0 %v557
        %v568 = vpop.f32.mrf.mxu0
        %v569 = vadd.f32 0.0, %v568
        %v570 = vpop.f32.mrf.mxu0
        %571 = vdwg.mxu0
        %572 = vmatpush.bf16.msra.mxu0 0
        %573 = vmatpush.bf16.msra.mxu0 0
        %574 = vmatpush.bf16.msra.mxu0 0
        %575 = vmatpush.bf16.msra.mxu0 0
        %576 = vmatpush.bf16.msra.mxu0 0
        %577 = vmatpush.bf16.msra.mxu0 0
        %578 = vmatpush.bf16.msra.mxu0 0
        %579 = vmatpush.bf16.msra.mxu0 %v552
        %580 = vmatmul.bf16.gmra.mxu0 %v557
        %v581 = vpop.f32.mrf.mxu0
        %v582 = vadd.f32 0.0, %v581
        %v583 = vpop.f32.mrf.mxu0
        %584 = vdwg.mxu0
        %v586 = vsel %vm555, %v450, 0
        %588 = vmatpush.bf16.msra.mxu0 0
        %589 = vmatpush.bf16.msra.mxu0 0
        %590 = vmatpush.bf16.msra.mxu0 0
        %591 = vmatpush.bf16.msra.mxu0 0
        %592 = vmatpush.bf16.msra.mxu0 0
        %593 = vmatpush.bf16.msra.mxu0 0
        %594 = vmatpush.bf16.msra.mxu0 0
        %595 = vmatpush.bf16.msra.mxu0 %v448
        %596 = vmatmul.bf16.gmra.mxu0 %v586
        %v597 = vpop.f32.mrf.mxu0
        %v598 = vadd.f32 %v569, %v597
        %v599 = vpop.f32.mrf.mxu0
        %600 = vdwg.mxu0
        %601 = vmatpush.bf16.msra.mxu0 0
        %602 = vmatpush.bf16.msra.mxu0 0
        %603 = vmatpush.bf16.msra.mxu0 0
        %604 = vmatpush.bf16.msra.mxu0 0
        %605 = vmatpush.bf16.msra.mxu0 0
        %606 = vmatpush.bf16.msra.mxu0 0
        %607 = vmatpush.bf16.msra.mxu0 0
        %608 = vmatpush.bf16.msra.mxu0 %v449
        %609 = vmatmul.bf16.gmra.mxu0 %v586
        %v610 = vpop.f32.mrf.mxu0
        %v611 = vadd.f32 %v582, %v610
        %v612 = vpop.f32.mrf.mxu0
        %613 = vdwg.mxu0
        %s614 = scalar_lea.vmem [#allocation8], 2
        %v615 = vld [vmem:[%s614] ss:$8 sm:$0x3]
        %616 = vrot.lane.b32.xlu0 %v339, 15
        %v617 = vpop.permute.xlu0 %616
        %618 = vrot.lane.b32.xlu0 %v341, 15
        %v619 = vpop.permute.xlu0 %618
        %620 = vrot.lane.b32.xlu0 %v340, 15
        %v621 = vpop.permute.xlu0 %620
        %622 = vrot.lane.b32.xlu0 %v342, 15
        %v623 = vpop.permute.xlu0 %622
        %vm624 = vcmp.lt.s32.totalorder %v357, 15
        %v625 = vsel %vm624, %v617, %v621
        %v626 = vsel %vm624, %v619, %v623
        %v627 = vsel %vm624, %v621, %v617
        %v628 = vsel %vm624, %v623, %v619
        %v630 = vperm.slane %v615, 0
        %v631 = vperm.slane %v615, 1
        %v634 = vmul.f32 %v627, %v630
        %v635 = vmul.f32 %v625, %v631
        %v636 = vmul.f32 %v628, %v630
        %v637 = vmul.f32 %v626, %v631
        %638 = vrot.lane.b32.xlu0 %v343, 15
        %v639 = vpop.permute.xlu0 %638
        %640 = vrot.lane.b32.xlu0 %v345, 15
        %v641 = vpop.permute.xlu0 %640
        %642 = vrot.lane.b32.xlu0 %v344, 15
        %v643 = vpop.permute.xlu0 %642
        %644 = vrot.lane.b32.xlu0 %v346, 15
        %v645 = vpop.permute.xlu0 %644
        %v646 = vsel %vm624, %v639, %v643
        %v647 = vsel %vm624, %v641, %v645
        %v648 = vsel %vm624, %v643, %v639
        %v649 = vsel %vm624, %v645, %v641
        %v650 = vmul.f32 %v648, %v630
        %v651 = vmul.f32 %v646, %v631
        %v652 = vmul.f32 %v649, %v630
        %v653 = vmul.f32 %v647, %v631
        %v654 = vsub.f32 %v634, %v339
        %v655 = vsub.f32 %v635, %v340
        %v656 = vsub.f32 %v636, %v341
        %v657 = vsub.f32 %v637, %v342
        %v658 = vsub.f32 %v650, %v343
        %v659 = vsub.f32 %v651, %v344
        %v660 = vsub.f32 %v652, %v345
        %v661 = vsub.f32 %v653, %v346
        %v662 = vmul.f32 %v658, %v658
        %v663 = vmul.f32 %v659, %v659
        %v664 = vmul.f32 %v660, %v660
        %v665 = vmul.f32 %v661, %v661
        %v666 = vadd.f32 %v662, 1.0
        %v667 = vadd.f32 %v663, 1.0
        %v668 = vadd.f32 %v664, 1.0
        %v669 = vadd.f32 %v665, 1.0
        %v670 = vrsqrt.pop %v666
        %v671 = vmul.f32 %v670, %v666
        %v672 = vmul.f32 %v671, %v670
        %v673 = vmul.f32 0.5, %v672
        %v674 = vsub.f32 1.5, %v673
        %v675 = vmul.f32 %v670, %v674
        %vm676 = vweird.f32 %v666
        %vm677 = vweird.f32 %v670
        %vm678 = vmor %vm676, %vm677
        %v679 = vsel %vm678, %v670, %v675
        %v680 = vrsqrt.pop %v667
        %v681 = vmul.f32 %v680, %v667
        %v682 = vmul.f32 %v681, %v680
        %v683 = vmul.f32 0.5, %v682
        %v684 = vsub.f32 1.5, %v683
        %v685 = vmul.f32 %v680, %v684
        %vm686 = vweird.f32 %v667
        %vm687 = vweird.f32 %v680
        %vm688 = vmor %vm686, %vm687
        %v689 = vsel %vm688, %v680, %v685
        %v690 = vrsqrt.pop %v668
        %v691 = vmul.f32 %v690, %v668
        %v692 = vmul.f32 %v691, %v690
        %v693 = vmul.f32 0.5, %v692
        %v694 = vsub.f32 1.5, %v693
        %v695 = vmul.f32 %v690, %v694
        %vm696 = vweird.f32 %v668
        %vm697 = vweird.f32 %v690
        %vm698 = vmor %vm696, %vm697
        %v699 = vsel %vm698, %v690, %v695
        %v700 = vrsqrt.pop %v669
        %v701 = vmul.f32 %v700, %v669
        %v702 = vmul.f32 %v701, %v700
        %v703 = vmul.f32 0.5, %v702
        %v704 = vsub.f32 1.5, %v703
        %v705 = vmul.f32 %v700, %v704
        %vm706 = vweird.f32 %v669
        %vm707 = vweird.f32 %v700
        %vm708 = vmor %vm706, %vm707
        %v709 = vsel %vm708, %v700, %v705
        %v710 = vmul.f32 %v654, %v679
        %v711 = vmul.f32 %v655, %v689
        %v712 = vmul.f32 %v656, %v699
        %v713 = vmul.f32 %v657, %v709
        %v714 = vpack.c.bf16 %v712, %v710
        %v715 = vpack.c.bf16 %v713, %v711
        %s716 = scalar_lea.vmem [#allocation7], 8
        %v717 = vld [vmem:[%s716] sm:$0xf]
        %v719 = vsel %vm555, %v717, 0
        %721 = vmatpush.bf16.msra.mxu0 0
        %722 = vmatpush.bf16.msra.mxu0 0
        %723 = vmatpush.bf16.msra.mxu0 0
        %724 = vmatpush.bf16.msra.mxu0 0
        %725 = vmatpush.bf16.msra.mxu0 0
        %726 = vmatpush.bf16.msra.mxu0 0
        %727 = vmatpush.bf16.msra.mxu0 0
        %728 = vmatpush.bf16.msra.mxu0 %v714
        %729 = vmatmul.bf16.gmra.mxu0 %v719
        %v730 = vpop.f32.mrf.mxu0
        %v731 = vadd.f32 0.0, %v730
        %v732 = vpop.f32.mrf.mxu0
        %733 = vdwg.mxu0
        %734 = vmatpush.bf16.msra.mxu0 0
        %735 = vmatpush.bf16.msra.mxu0 0
        %736 = vmatpush.bf16.msra.mxu0 0
        %737 = vmatpush.bf16.msra.mxu0 0
        %738 = vmatpush.bf16.msra.mxu0 0
        %739 = vmatpush.bf16.msra.mxu0 0
        %740 = vmatpush.bf16.msra.mxu0 0
        %741 = vmatpush.bf16.msra.mxu0 %v715
        %742 = vmatmul.bf16.gmra.mxu0 %v719
        %v743 = vpop.f32.mrf.mxu0
        %v744 = vadd.f32 0.0, %v743
        %v745 = vpop.f32.mrf.mxu0
        %746 = vdwg.mxu0
        %v747 = vadd.f32 %v598, %v731
        %v748 = vadd.f32 %v611, %v744
        %s749 = scalar_lea.vmem [#allocation8], 3
        %v750 = vld [vmem:[%s749] ss:$8 sm:$0x3]
        %751 = vrot.lane.b32.xlu0 %v339, 1
        %v752 = vpop.permute.xlu0 %751
        %753 = vrot.lane.b32.xlu0 %v341, 1
        %v754 = vpop.permute.xlu0 %753
        %755 = vrot.lane.b32.xlu0 %v340, 1
        %v756 = vpop.permute.xlu0 %755
        %757 = vrot.lane.b32.xlu0 %v342, 1
        %v758 = vpop.permute.xlu0 %757
        %vm759 = vcmp.lt.s32.totalorder %v357, 1
        %v760 = vsel %vm759, %v752, %v756
        %v761 = vsel %vm759, %v754, %v758
        %v762 = vsel %vm759, %v756, %v752
        %v763 = vsel %vm759, %v758, %v754
        %v765 = vperm.slane %v750, 0
        %v766 = vperm.slane %v750, 1
        %v769 = vmul.f32 %v762, %v765
        %v770 = vmul.f32 %v760, %v766
        %v771 = vmul.f32 %v763, %v765
        %v772 = vmul.f32 %v761, %v766
        %773 = vrot.lane.b32.xlu0 %v343, 1
        %v774 = vpop.permute.xlu0 %773
        %775 = vrot.lane.b32.xlu0 %v345, 1
        %v776 = vpop.permute.xlu0 %775
        %777 = vrot.lane.b32.xlu0 %v344, 1
        %v778 = vpop.permute.xlu0 %777
        %779 = vrot.lane.b32.xlu0 %v346, 1
        %v780 = vpop.permute.xlu0 %779
        %v781 = vsel %vm759, %v774, %v778
        %v782 = vsel %vm759, %v776, %v780
        %v783 = vsel %vm759, %v778, %v774
        %v784 = vsel %vm759, %v780, %v776
        %v785 = vmul.f32 %v783, %v765
        %v786 = vmul.f32 %v781, %v766
        %v787 = vmul.f32 %v784, %v765
        %v788 = vmul.f32 %v782, %v766
        %v789 = vsub.f32 %v769, %v339
        %v790 = vsub.f32 %v770, %v340
        %v791 = vsub.f32 %v771, %v341
        %v792 = vsub.f32 %v772, %v342
        %v793 = vsub.f32 %v785, %v343
        %v794 = vsub.f32 %v786, %v344
        %v795 = vsub.f32 %v787, %v345
        %v796 = vsub.f32 %v788, %v346
        %v797 = vmul.f32 %v793, %v793
        %v798 = vmul.f32 %v794, %v794
        %v799 = vmul.f32 %v795, %v795
        %v800 = vmul.f32 %v796, %v796
        %v801 = vadd.f32 %v797, 1.0
        %v802 = vadd.f32 %v798, 1.0
        %v803 = vadd.f32 %v799, 1.0
        %v804 = vadd.f32 %v800, 1.0
        %v805 = vrsqrt.pop %v801
        %v806 = vmul.f32 %v805, %v801
        %v807 = vmul.f32 %v806, %v805
        %v808 = vmul.f32 0.5, %v807
        %v809 = vsub.f32 1.5, %v808
        %v810 = vmul.f32 %v805, %v809
        %vm811 = vweird.f32 %v801
        %vm812 = vweird.f32 %v805
        %vm813 = vmor %vm811, %vm812
        %v814 = vsel %vm813, %v805, %v810
        %v815 = vrsqrt.pop %v802
        %v816 = vmul.f32 %v815, %v802
        %v817 = vmul.f32 %v816, %v815
        %v818 = vmul.f32 0.5, %v817
        %v819 = vsub.f32 1.5, %v818
        %v820 = vmul.f32 %v815, %v819
        %vm821 = vweird.f32 %v802
        %vm822 = vweird.f32 %v815
        %vm823 = vmor %vm821, %vm822
        %v824 = vsel %vm823, %v815, %v820
        %v825 = vrsqrt.pop %v803
        %v826 = vmul.f32 %v825, %v803
        %v827 = vmul.f32 %v826, %v825
        %v828 = vmul.f32 0.5, %v827
        %v829 = vsub.f32 1.5, %v828
        %v830 = vmul.f32 %v825, %v829
        %vm831 = vweird.f32 %v803
        %vm832 = vweird.f32 %v825
        %vm833 = vmor %vm831, %vm832
        %v834 = vsel %vm833, %v825, %v830
        %v835 = vrsqrt.pop %v804
        %v836 = vmul.f32 %v835, %v804
        %v837 = vmul.f32 %v836, %v835
        %v838 = vmul.f32 0.5, %v837
        %v839 = vsub.f32 1.5, %v838
        %v840 = vmul.f32 %v835, %v839
        %vm841 = vweird.f32 %v804
        %vm842 = vweird.f32 %v835
        %vm843 = vmor %vm841, %vm842
        %v844 = vsel %vm843, %v835, %v840
        %v845 = vmul.f32 %v789, %v814
        %v846 = vmul.f32 %v790, %v824
        %v847 = vmul.f32 %v791, %v834
        %v848 = vmul.f32 %v792, %v844
        %v849 = vpack.c.bf16 %v847, %v845
        %v850 = vpack.c.bf16 %v848, %v846
        %s851 = scalar_lea.vmem [#allocation7], 12
        %v852 = vld [vmem:[%s851] sm:$0xf]
        %v854 = vsel %vm555, %v852, 0
        %856 = vmatpush.bf16.msra.mxu0 0
        %857 = vmatpush.bf16.msra.mxu0 0
        %858 = vmatpush.bf16.msra.mxu0 0
        %859 = vmatpush.bf16.msra.mxu0 0
        %860 = vmatpush.bf16.msra.mxu0 0
        %861 = vmatpush.bf16.msra.mxu0 0
        %862 = vmatpush.bf16.msra.mxu0 0
        %863 = vmatpush.bf16.msra.mxu0 %v849
        %864 = vmatmul.bf16.gmra.mxu0 %v854
        %v865 = vpop.f32.mrf.mxu0
        %v866 = vadd.f32 0.0, %v865
        %v867 = vpop.f32.mrf.mxu0
        %868 = vdwg.mxu0
        %869 = vmatpush.bf16.msra.mxu0 0
        %870 = vmatpush.bf16.msra.mxu0 0
        %871 = vmatpush.bf16.msra.mxu0 0
        %872 = vmatpush.bf16.msra.mxu0 0
        %873 = vmatpush.bf16.msra.mxu0 0
        %874 = vmatpush.bf16.msra.mxu0 0
        %875 = vmatpush.bf16.msra.mxu0 0
        %876 = vmatpush.bf16.msra.mxu0 %v850
        %877 = vmatmul.bf16.gmra.mxu0 %v854
        %v878 = vpop.f32.mrf.mxu0
        %v879 = vadd.f32 0.0, %v878
        %v880 = vpop.f32.mrf.mxu0
        %881 = vdwg.mxu0
        %v882 = vadd.f32 %v747, %v866
        %v883 = vadd.f32 %v748, %v879
        %s884 = scalar_lea.vmem [#allocation8], 4
        %v885 = vld [vmem:[%s884] ss:$8 sm:$0x3]
        %886 = vrot.lane.b32.xlu0 %v339, 127
        %v887 = vpop.permute.xlu0 %886
        %888 = vrot.lane.b32.xlu0 %v341, 127
        %v889 = vpop.permute.xlu0 %888
        %890 = vrot.lane.b32.xlu0 %v340, 127
        %v891 = vpop.permute.xlu0 %890
        %892 = vrot.lane.b32.xlu0 %v342, 127
        %v893 = vpop.permute.xlu0 %892
        %vm894 = vcmp.lt.s32.totalorder %v357, 127
        %v895 = vsel %vm894, %v887, %v891
        %v896 = vsel %vm894, %v889, %v893
        %v897 = vsel %vm894, %v891, %v887
        %v898 = vsel %vm894, %v893, %v889
        %v900 = vperm.slane %v885, 0
        %v901 = vperm.slane %v885, 1
        %v904 = vmul.f32 %v895, %v900
        %v905 = vmul.f32 %v897, %v901
        %v906 = vmul.f32 %v896, %v900
        %v907 = vmul.f32 %v898, %v901
        %908 = vrot.lane.b32.xlu0 %v343, 127
        %v909 = vpop.permute.xlu0 %908
        %910 = vrot.lane.b32.xlu0 %v345, 127
        %v911 = vpop.permute.xlu0 %910
        %912 = vrot.lane.b32.xlu0 %v344, 127
        %v913 = vpop.permute.xlu0 %912
        %914 = vrot.lane.b32.xlu0 %v346, 127
        %v915 = vpop.permute.xlu0 %914
        %v916 = vsel %vm894, %v909, %v913
        %v917 = vsel %vm894, %v911, %v915
        %v918 = vsel %vm894, %v913, %v909
        %v919 = vsel %vm894, %v915, %v911
        %v920 = vmul.f32 %v916, %v900
        %v921 = vmul.f32 %v918, %v901
        %v922 = vmul.f32 %v917, %v900
        %v923 = vmul.f32 %v919, %v901
        %v924 = vsub.f32 %v904, %v339
        %v925 = vsub.f32 %v905, %v340
        %v926 = vsub.f32 %v906, %v341
        %v927 = vsub.f32 %v907, %v342
        %v928 = vsub.f32 %v920, %v343
        %v929 = vsub.f32 %v921, %v344
        %v930 = vsub.f32 %v922, %v345
        %v931 = vsub.f32 %v923, %v346
        %v932 = vmul.f32 %v928, %v928
        %v933 = vmul.f32 %v929, %v929
        %v934 = vmul.f32 %v930, %v930
        %v935 = vmul.f32 %v931, %v931
        %v936 = vadd.f32 %v932, 1.0
        %v937 = vadd.f32 %v933, 1.0
        %v938 = vadd.f32 %v934, 1.0
        %v939 = vadd.f32 %v935, 1.0
        %v940 = vrsqrt.pop %v936
        %v941 = vmul.f32 %v940, %v936
        %v942 = vmul.f32 %v941, %v940
        %v943 = vmul.f32 0.5, %v942
        %v944 = vsub.f32 1.5, %v943
        %v945 = vmul.f32 %v940, %v944
        %vm946 = vweird.f32 %v936
        %vm947 = vweird.f32 %v940
        %vm948 = vmor %vm946, %vm947
        %v949 = vsel %vm948, %v940, %v945
        %v950 = vrsqrt.pop %v937
        %v951 = vmul.f32 %v950, %v937
        %v952 = vmul.f32 %v951, %v950
        %v953 = vmul.f32 0.5, %v952
        %v954 = vsub.f32 1.5, %v953
        %v955 = vmul.f32 %v950, %v954
        %vm956 = vweird.f32 %v937
        %vm957 = vweird.f32 %v950
        %vm958 = vmor %vm956, %vm957
        %v959 = vsel %vm958, %v950, %v955
        %v960 = vrsqrt.pop %v938
        %v961 = vmul.f32 %v960, %v938
        %v962 = vmul.f32 %v961, %v960
        %v963 = vmul.f32 0.5, %v962
        %v964 = vsub.f32 1.5, %v963
        %v965 = vmul.f32 %v960, %v964
        %vm966 = vweird.f32 %v938
        %vm967 = vweird.f32 %v960
        %vm968 = vmor %vm966, %vm967
        %v969 = vsel %vm968, %v960, %v965
        %v970 = vrsqrt.pop %v939
        %v971 = vmul.f32 %v970, %v939
        %v972 = vmul.f32 %v971, %v970
        %v973 = vmul.f32 0.5, %v972
        %v974 = vsub.f32 1.5, %v973
        %v975 = vmul.f32 %v970, %v974
        %vm976 = vweird.f32 %v939
        %vm977 = vweird.f32 %v970
        %vm978 = vmor %vm976, %vm977
        %v979 = vsel %vm978, %v970, %v975
        %v980 = vmul.f32 %v924, %v949
        %v981 = vmul.f32 %v925, %v959
        %v982 = vmul.f32 %v926, %v969
        %v983 = vmul.f32 %v927, %v979
        %v984 = vpack.c.bf16 %v982, %v980
        %v985 = vpack.c.bf16 %v983, %v981
        %s986 = scalar_lea.vmem [#allocation7], 16
        %v987 = vld [vmem:[%s986] sm:$0xf]
        %v989 = vsel %vm555, %v987, 0
        %991 = vmatpush.bf16.msra.mxu0 0
        %992 = vmatpush.bf16.msra.mxu0 0
        %993 = vmatpush.bf16.msra.mxu0 0
        %994 = vmatpush.bf16.msra.mxu0 0
        %995 = vmatpush.bf16.msra.mxu0 0
        %996 = vmatpush.bf16.msra.mxu0 0
        %997 = vmatpush.bf16.msra.mxu0 0
        %998 = vmatpush.bf16.msra.mxu0 %v984
        %999 = vmatmul.bf16.gmra.mxu0 %v989
        %v1000 = vpop.f32.mrf.mxu0
        %v1001 = vadd.f32 0.0, %v1000
        %v1002 = vpop.f32.mrf.mxu0
        %1003 = vdwg.mxu0
        %1004 = vmatpush.bf16.msra.mxu0 0
        %1005 = vmatpush.bf16.msra.mxu0 0
        %1006 = vmatpush.bf16.msra.mxu0 0
        %1007 = vmatpush.bf16.msra.mxu0 0
        %1008 = vmatpush.bf16.msra.mxu0 0
        %1009 = vmatpush.bf16.msra.mxu0 0
        %1010 = vmatpush.bf16.msra.mxu0 0
        %1011 = vmatpush.bf16.msra.mxu0 %v985
        %1012 = vmatmul.bf16.gmra.mxu0 %v989
        %v1013 = vpop.f32.mrf.mxu0
        %v1014 = vadd.f32 0.0, %v1013
        %v1015 = vpop.f32.mrf.mxu0
        %1016 = vdwg.mxu0
        %v1017 = vadd.f32 %v882, %v1001
        %v1018 = vadd.f32 %v883, %v1014
        %s1019 = scalar_lea.vmem [#allocation8], 5
        %v1020 = vld [vmem:[%s1019] ss:$8 sm:$0x3]
        %1021 = vrot.lane.b32.xlu0 %v339, 113
        %v1022 = vpop.permute.xlu0 %1021
        %1023 = vrot.lane.b32.xlu0 %v341, 113
        %v1024 = vpop.permute.xlu0 %1023
        %1025 = vrot.lane.b32.xlu0 %v340, 113
        %v1026 = vpop.permute.xlu0 %1025
        %1027 = vrot.lane.b32.xlu0 %v342, 113
        %v1028 = vpop.permute.xlu0 %1027
        %vm1029 = vcmp.lt.s32.totalorder %v357, 113
        %v1030 = vsel %vm1029, %v1022, %v1026
        %v1031 = vsel %vm1029, %v1024, %v1028
        %v1032 = vsel %vm1029, %v1026, %v1022
        %v1033 = vsel %vm1029, %v1028, %v1024
        %v1035 = vperm.slane %v1020, 0
        %v1036 = vperm.slane %v1020, 1
        %v1039 = vmul.f32 %v1030, %v1035
        %v1040 = vmul.f32 %v1032, %v1036
        %v1041 = vmul.f32 %v1031, %v1035
        %v1042 = vmul.f32 %v1033, %v1036
        %1043 = vrot.lane.b32.xlu0 %v343, 113
        %v1044 = vpop.permute.xlu0 %1043
        %1045 = vrot.lane.b32.xlu0 %v345, 113
        %v1046 = vpop.permute.xlu0 %1045
        %1047 = vrot.lane.b32.xlu0 %v344, 113
        %v1048 = vpop.permute.xlu0 %1047
        %1049 = vrot.lane.b32.xlu0 %v346, 113
        %v1050 = vpop.permute.xlu0 %1049
        %v1051 = vsel %vm1029, %v1044, %v1048
        %v1052 = vsel %vm1029, %v1046, %v1050
        %v1053 = vsel %vm1029, %v1048, %v1044
        %v1054 = vsel %vm1029, %v1050, %v1046
        %v1055 = vmul.f32 %v1051, %v1035
        %v1056 = vmul.f32 %v1053, %v1036
        %v1057 = vmul.f32 %v1052, %v1035
        %v1058 = vmul.f32 %v1054, %v1036
        %v1059 = vsub.f32 %v1039, %v339
        %v1060 = vsub.f32 %v1040, %v340
        %v1061 = vsub.f32 %v1041, %v341
        %v1062 = vsub.f32 %v1042, %v342
        %v1063 = vsub.f32 %v1055, %v343
        %v1064 = vsub.f32 %v1056, %v344
        %v1065 = vsub.f32 %v1057, %v345
        %v1066 = vsub.f32 %v1058, %v346
        %v1067 = vmul.f32 %v1063, %v1063
        %v1068 = vmul.f32 %v1064, %v1064
        %v1069 = vmul.f32 %v1065, %v1065
        %v1070 = vmul.f32 %v1066, %v1066
        %v1071 = vadd.f32 %v1067, 1.0
        %v1072 = vadd.f32 %v1068, 1.0
        %v1073 = vadd.f32 %v1069, 1.0
        %v1074 = vadd.f32 %v1070, 1.0
        %v1075 = vrsqrt.pop %v1071
        %v1076 = vmul.f32 %v1075, %v1071
        %v1077 = vmul.f32 %v1076, %v1075
        %v1078 = vmul.f32 0.5, %v1077
        %v1079 = vsub.f32 1.5, %v1078
        %v1080 = vmul.f32 %v1075, %v1079
        %vm1081 = vweird.f32 %v1071
        %vm1082 = vweird.f32 %v1075
        %vm1083 = vmor %vm1081, %vm1082
        %v1084 = vsel %vm1083, %v1075, %v1080
        %v1085 = vrsqrt.pop %v1072
        %v1086 = vmul.f32 %v1085, %v1072
        %v1087 = vmul.f32 %v1086, %v1085
        %v1088 = vmul.f32 0.5, %v1087
        %v1089 = vsub.f32 1.5, %v1088
        %v1090 = vmul.f32 %v1085, %v1089
        %vm1091 = vweird.f32 %v1072
        %vm1092 = vweird.f32 %v1085
        %vm1093 = vmor %vm1091, %vm1092
        %v1094 = vsel %vm1093, %v1085, %v1090
        %v1095 = vrsqrt.pop %v1073
        %v1096 = vmul.f32 %v1095, %v1073
        %v1097 = vmul.f32 %v1096, %v1095
        %v1098 = vmul.f32 0.5, %v1097
        %v1099 = vsub.f32 1.5, %v1098
        %v1100 = vmul.f32 %v1095, %v1099
        %vm1101 = vweird.f32 %v1073
        %vm1102 = vweird.f32 %v1095
        %vm1103 = vmor %vm1101, %vm1102
        %v1104 = vsel %vm1103, %v1095, %v1100
        %v1105 = vrsqrt.pop %v1074
        %v1106 = vmul.f32 %v1105, %v1074
        %v1107 = vmul.f32 %v1106, %v1105
        %v1108 = vmul.f32 0.5, %v1107
        %v1109 = vsub.f32 1.5, %v1108
        %v1110 = vmul.f32 %v1105, %v1109
        %vm1111 = vweird.f32 %v1074
        %vm1112 = vweird.f32 %v1105
        %vm1113 = vmor %vm1111, %vm1112
        %v1114 = vsel %vm1113, %v1105, %v1110
        %v1115 = vmul.f32 %v1059, %v1084
        %v1116 = vmul.f32 %v1060, %v1094
        %v1117 = vmul.f32 %v1061, %v1104
        %v1118 = vmul.f32 %v1062, %v1114
        %v1119 = vpack.c.bf16 %v1117, %v1115
        %v1120 = vpack.c.bf16 %v1118, %v1116
        %s1121 = scalar_lea.vmem [#allocation7], 20
        %v1122 = vld [vmem:[%s1121] sm:$0xf]
        %v1124 = vsel %vm555, %v1122, 0
        %1126 = vmatpush.bf16.msra.mxu0 0
        %1127 = vmatpush.bf16.msra.mxu0 0
        %1128 = vmatpush.bf16.msra.mxu0 0
        %1129 = vmatpush.bf16.msra.mxu0 0
        %1130 = vmatpush.bf16.msra.mxu0 0
        %1131 = vmatpush.bf16.msra.mxu0 0
        %1132 = vmatpush.bf16.msra.mxu0 0
        %1133 = vmatpush.bf16.msra.mxu0 %v1119
        %1134 = vmatmul.bf16.gmra.mxu0 %v1124
        %v1135 = vpop.f32.mrf.mxu0
        %v1136 = vadd.f32 0.0, %v1135
        %v1137 = vpop.f32.mrf.mxu0
        %1138 = vdwg.mxu0
        %1139 = vmatpush.bf16.msra.mxu0 0
        %1140 = vmatpush.bf16.msra.mxu0 0
        %1141 = vmatpush.bf16.msra.mxu0 0
        %1142 = vmatpush.bf16.msra.mxu0 0
        %1143 = vmatpush.bf16.msra.mxu0 0
        %1144 = vmatpush.bf16.msra.mxu0 0
        %1145 = vmatpush.bf16.msra.mxu0 0
        %1146 = vmatpush.bf16.msra.mxu0 %v1120
        %1147 = vmatmul.bf16.gmra.mxu0 %v1124
        %v1148 = vpop.f32.mrf.mxu0
        %v1149 = vadd.f32 0.0, %v1148
        %v1150 = vpop.f32.mrf.mxu0
        %1151 = vdwg.mxu0
        %v1152 = vadd.f32 %v1017, %v1136
        %v1153 = vadd.f32 %v1018, %v1149
        %s1154 = scalar_lea.vmem [#allocation8], 6
        %v1155 = vld [vmem:[%s1154] ss:$8 sm:$0x3]
        %1156 = vrot.lane.b32.xlu0 %v339, 112
        %v1157 = vpop.permute.xlu0 %1156
        %1158 = vrot.lane.b32.xlu0 %v341, 112
        %v1159 = vpop.permute.xlu0 %1158
        %1160 = vrot.lane.b32.xlu0 %v340, 112
        %v1161 = vpop.permute.xlu0 %1160
        %1162 = vrot.lane.b32.xlu0 %v342, 112
        %v1163 = vpop.permute.xlu0 %1162
        %vm1164 = vcmp.lt.s32.totalorder %v357, 112
        %v1165 = vsel %vm1164, %v1157, %v1161
        %v1166 = vsel %vm1164, %v1159, %v1163
        %v1167 = vsel %vm1164, %v1161, %v1157
        %v1168 = vsel %vm1164, %v1163, %v1159
        %v1170 = vperm.slane %v1155, 0
        %v1171 = vperm.slane %v1155, 1
        %v1174 = vmul.f32 %v1165, %v1170
        %v1175 = vmul.f32 %v1167, %v1171
        %v1176 = vmul.f32 %v1166, %v1170
        %v1177 = vmul.f32 %v1168, %v1171
        %1178 = vrot.lane.b32.xlu0 %v343, 112
        %v1179 = vpop.permute.xlu0 %1178
        %1180 = vrot.lane.b32.xlu0 %v345, 112
        %v1181 = vpop.permute.xlu0 %1180
        %1182 = vrot.lane.b32.xlu0 %v344, 112
        %v1183 = vpop.permute.xlu0 %1182
        %1184 = vrot.lane.b32.xlu0 %v346, 112
        %v1185 = vpop.permute.xlu0 %1184
        %v1186 = vsel %vm1164, %v1179, %v1183
        %v1187 = vsel %vm1164, %v1181, %v1185
        %v1188 = vsel %vm1164, %v1183, %v1179
        %v1189 = vsel %vm1164, %v1185, %v1181
        %v1190 = vmul.f32 %v1186, %v1170
        %v1191 = vmul.f32 %v1188, %v1171
        %v1192 = vmul.f32 %v1187, %v1170
        %v1193 = vmul.f32 %v1189, %v1171
        %v1194 = vsub.f32 %v1174, %v339
        %v1195 = vsub.f32 %v1175, %v340
        %v1196 = vsub.f32 %v1176, %v341
        %v1197 = vsub.f32 %v1177, %v342
        %v1198 = vsub.f32 %v1190, %v343
        %v1199 = vsub.f32 %v1191, %v344
        %v1200 = vsub.f32 %v1192, %v345
        %v1201 = vsub.f32 %v1193, %v346
        %v1202 = vmul.f32 %v1198, %v1198
        %v1203 = vmul.f32 %v1199, %v1199
        %v1204 = vmul.f32 %v1200, %v1200
        %v1205 = vmul.f32 %v1201, %v1201
        %v1206 = vadd.f32 %v1202, 1.0
        %v1207 = vadd.f32 %v1203, 1.0
        %v1208 = vadd.f32 %v1204, 1.0
        %v1209 = vadd.f32 %v1205, 1.0
        %v1210 = vrsqrt.pop %v1206
        %v1211 = vmul.f32 %v1210, %v1206
        %v1212 = vmul.f32 %v1211, %v1210
        %v1213 = vmul.f32 0.5, %v1212
        %v1214 = vsub.f32 1.5, %v1213
        %v1215 = vmul.f32 %v1210, %v1214
        %vm1216 = vweird.f32 %v1206
        %vm1217 = vweird.f32 %v1210
        %vm1218 = vmor %vm1216, %vm1217
        %v1219 = vsel %vm1218, %v1210, %v1215
        %v1220 = vrsqrt.pop %v1207
        %v1221 = vmul.f32 %v1220, %v1207
        %v1222 = vmul.f32 %v1221, %v1220
        %v1223 = vmul.f32 0.5, %v1222
        %v1224 = vsub.f32 1.5, %v1223
        %v1225 = vmul.f32 %v1220, %v1224
        %vm1226 = vweird.f32 %v1207
        %vm1227 = vweird.f32 %v1220
        %vm1228 = vmor %vm1226, %vm1227
        %v1229 = vsel %vm1228, %v1220, %v1225
        %v1230 = vrsqrt.pop %v1208
        %v1231 = vmul.f32 %v1230, %v1208
        %v1232 = vmul.f32 %v1231, %v1230
        %v1233 = vmul.f32 0.5, %v1232
        %v1234 = vsub.f32 1.5, %v1233
        %v1235 = vmul.f32 %v1230, %v1234
        %vm1236 = vweird.f32 %v1208
        %vm1237 = vweird.f32 %v1230
        %vm1238 = vmor %vm1236, %vm1237
        %v1239 = vsel %vm1238, %v1230, %v1235
        %v1240 = vrsqrt.pop %v1209
        %v1241 = vmul.f32 %v1240, %v1209
        %v1242 = vmul.f32 %v1241, %v1240
        %v1243 = vmul.f32 0.5, %v1242
        %v1244 = vsub.f32 1.5, %v1243
        %v1245 = vmul.f32 %v1240, %v1244
        %vm1246 = vweird.f32 %v1209
        %vm1247 = vweird.f32 %v1240
        %vm1248 = vmor %vm1246, %vm1247
        %v1249 = vsel %vm1248, %v1240, %v1245
        %v1250 = vmul.f32 %v1194, %v1219
        %v1251 = vmul.f32 %v1195, %v1229
        %v1252 = vmul.f32 %v1196, %v1239
        %v1253 = vmul.f32 %v1197, %v1249
        %v1254 = vpack.c.bf16 %v1252, %v1250
        %v1255 = vpack.c.bf16 %v1253, %v1251
        %s1256 = scalar_lea.vmem [#allocation7], 24
        %v1257 = vld [vmem:[%s1256] sm:$0xf]
        %v1259 = vsel %vm555, %v1257, 0
        %1261 = vmatpush.bf16.msra.mxu0 0
        %1262 = vmatpush.bf16.msra.mxu0 0
        %1263 = vmatpush.bf16.msra.mxu0 0
        %1264 = vmatpush.bf16.msra.mxu0 0
        %1265 = vmatpush.bf16.msra.mxu0 0
        %1266 = vmatpush.bf16.msra.mxu0 0
        %1267 = vmatpush.bf16.msra.mxu0 0
        %1268 = vmatpush.bf16.msra.mxu0 %v1254
        %1269 = vmatmul.bf16.gmra.mxu0 %v1259
        %v1270 = vpop.f32.mrf.mxu0
        %v1271 = vadd.f32 0.0, %v1270
        %v1272 = vpop.f32.mrf.mxu0
        %1273 = vdwg.mxu0
        %1274 = vmatpush.bf16.msra.mxu0 0
        %1275 = vmatpush.bf16.msra.mxu0 0
        %1276 = vmatpush.bf16.msra.mxu0 0
        %1277 = vmatpush.bf16.msra.mxu0 0
        %1278 = vmatpush.bf16.msra.mxu0 0
        %1279 = vmatpush.bf16.msra.mxu0 0
        %1280 = vmatpush.bf16.msra.mxu0 0
        %1281 = vmatpush.bf16.msra.mxu0 %v1255
        %1282 = vmatmul.bf16.gmra.mxu0 %v1259
        %v1283 = vpop.f32.mrf.mxu0
        %v1284 = vadd.f32 0.0, %v1283
        %v1285 = vpop.f32.mrf.mxu0
        %1286 = vdwg.mxu0
        %v1287 = vadd.f32 %v1152, %v1271
        %v1288 = vadd.f32 %v1153, %v1284
        %s1289 = scalar_lea.vmem [#allocation8], 7
        %v1290 = vld [vmem:[%s1289] ss:$8 sm:$0x3]
        %1291 = vrot.lane.b32.xlu0 %v339, 111
        %v1292 = vpop.permute.xlu0 %1291
        %1293 = vrot.lane.b32.xlu0 %v341, 111
        %v1294 = vpop.permute.xlu0 %1293
        %1295 = vrot.lane.b32.xlu0 %v340, 111
        %v1296 = vpop.permute.xlu0 %1295
        %1297 = vrot.lane.b32.xlu0 %v342, 111
        %v1298 = vpop.permute.xlu0 %1297
        %vm1299 = vcmp.lt.s32.totalorder %v357, 111
        %v1300 = vsel %vm1299, %v1292, %v1296
        %v1301 = vsel %vm1299, %v1294, %v1298
        %v1302 = vsel %vm1299, %v1296, %v1292
        %v1303 = vsel %vm1299, %v1298, %v1294
        %v1305 = vperm.slane %v1290, 0
        %v1306 = vperm.slane %v1290, 1
        %v1309 = vmul.f32 %v1300, %v1305
        %v1310 = vmul.f32 %v1302, %v1306
        %v1311 = vmul.f32 %v1301, %v1305
        %v1312 = vmul.f32 %v1303, %v1306
        %1313 = vrot.lane.b32.xlu0 %v343, 111
        %v1314 = vpop.permute.xlu0 %1313
        %1315 = vrot.lane.b32.xlu0 %v345, 111
        %v1316 = vpop.permute.xlu0 %1315
        %1317 = vrot.lane.b32.xlu0 %v344, 111
        %v1318 = vpop.permute.xlu0 %1317
        %1319 = vrot.lane.b32.xlu0 %v346, 111
        %v1320 = vpop.permute.xlu0 %1319
        %v1321 = vsel %vm1299, %v1314, %v1318
        %v1322 = vsel %vm1299, %v1316, %v1320
        %v1323 = vsel %vm1299, %v1318, %v1314
        %v1324 = vsel %vm1299, %v1320, %v1316
        %v1325 = vmul.f32 %v1321, %v1305
        %v1326 = vmul.f32 %v1323, %v1306
        %v1327 = vmul.f32 %v1322, %v1305
        %v1328 = vmul.f32 %v1324, %v1306
        %v1329 = vsub.f32 %v1309, %v339
        %v1330 = vsub.f32 %v1310, %v340
        %v1331 = vsub.f32 %v1311, %v341
        %v1332 = vsub.f32 %v1312, %v342
        %v1333 = vsub.f32 %v1325, %v343
        %v1334 = vsub.f32 %v1326, %v344
        %v1335 = vsub.f32 %v1327, %v345
        %v1336 = vsub.f32 %v1328, %v346
        %v1337 = vmul.f32 %v1333, %v1333
        %v1338 = vmul.f32 %v1334, %v1334
        %v1339 = vmul.f32 %v1335, %v1335
        %v1340 = vmul.f32 %v1336, %v1336
        %v1341 = vadd.f32 %v1337, 1.0
        %v1342 = vadd.f32 %v1338, 1.0
        %v1343 = vadd.f32 %v1339, 1.0
        %v1344 = vadd.f32 %v1340, 1.0
        %v1345 = vrsqrt.pop %v1341
        %v1346 = vmul.f32 %v1345, %v1341
        %v1347 = vmul.f32 %v1346, %v1345
        %v1348 = vmul.f32 0.5, %v1347
        %v1349 = vsub.f32 1.5, %v1348
        %v1350 = vmul.f32 %v1345, %v1349
        %vm1351 = vweird.f32 %v1341
        %vm1352 = vweird.f32 %v1345
        %vm1353 = vmor %vm1351, %vm1352
        %v1354 = vsel %vm1353, %v1345, %v1350
        %v1355 = vrsqrt.pop %v1342
        %v1356 = vmul.f32 %v1355, %v1342
        %v1357 = vmul.f32 %v1356, %v1355
        %v1358 = vmul.f32 0.5, %v1357
        %v1359 = vsub.f32 1.5, %v1358
        %v1360 = vmul.f32 %v1355, %v1359
        %vm1361 = vweird.f32 %v1342
        %vm1362 = vweird.f32 %v1355
        %vm1363 = vmor %vm1361, %vm1362
        %v1364 = vsel %vm1363, %v1355, %v1360
        %v1365 = vrsqrt.pop %v1343
        %v1366 = vmul.f32 %v1365, %v1343
        %v1367 = vmul.f32 %v1366, %v1365
        %v1368 = vmul.f32 0.5, %v1367
        %v1369 = vsub.f32 1.5, %v1368
        %v1370 = vmul.f32 %v1365, %v1369
        %vm1371 = vweird.f32 %v1343
        %vm1372 = vweird.f32 %v1365
        %vm1373 = vmor %vm1371, %vm1372
        %v1374 = vsel %vm1373, %v1365, %v1370
        %v1375 = vrsqrt.pop %v1344
        %v1376 = vmul.f32 %v1375, %v1344
        %v1377 = vmul.f32 %v1376, %v1375
        %v1378 = vmul.f32 0.5, %v1377
        %v1379 = vsub.f32 1.5, %v1378
        %v1380 = vmul.f32 %v1375, %v1379
        %vm1381 = vweird.f32 %v1344
        %vm1382 = vweird.f32 %v1375
        %vm1383 = vmor %vm1381, %vm1382
        %v1384 = vsel %vm1383, %v1375, %v1380
        %v1385 = vmul.f32 %v1329, %v1354
        %v1386 = vmul.f32 %v1330, %v1364
        %v1387 = vmul.f32 %v1331, %v1374
        %v1388 = vmul.f32 %v1332, %v1384
        %v1389 = vpack.c.bf16 %v1387, %v1385
        %v1390 = vpack.c.bf16 %v1388, %v1386
        %s1391 = scalar_lea.vmem [#allocation7], 28
        %v1392 = vld [vmem:[%s1391] sm:$0xf]
        %v1394 = vsel %vm555, %v1392, 0
        %1396 = vmatpush.bf16.msra.mxu0 0
        %1397 = vmatpush.bf16.msra.mxu0 0
        %1398 = vmatpush.bf16.msra.mxu0 0
        %1399 = vmatpush.bf16.msra.mxu0 0
        %1400 = vmatpush.bf16.msra.mxu0 0
        %1401 = vmatpush.bf16.msra.mxu0 0
        %1402 = vmatpush.bf16.msra.mxu0 0
        %1403 = vmatpush.bf16.msra.mxu0 %v1389
        %1404 = vmatmul.bf16.gmra.mxu0 %v1394
        %v1405 = vpop.f32.mrf.mxu0
        %v1406 = vadd.f32 0.0, %v1405
        %v1407 = vpop.f32.mrf.mxu0
        %1408 = vdwg.mxu0
        %1409 = vmatpush.bf16.msra.mxu0 0
        %1410 = vmatpush.bf16.msra.mxu0 0
        %1411 = vmatpush.bf16.msra.mxu0 0
        %1412 = vmatpush.bf16.msra.mxu0 0
        %1413 = vmatpush.bf16.msra.mxu0 0
        %1414 = vmatpush.bf16.msra.mxu0 0
        %1415 = vmatpush.bf16.msra.mxu0 0
        %1416 = vmatpush.bf16.msra.mxu0 %v1390
        %1417 = vmatmul.bf16.gmra.mxu0 %v1394
        %v1418 = vpop.f32.mrf.mxu0
        %v1419 = vadd.f32 0.0, %v1418
        %v1420 = vpop.f32.mrf.mxu0
        %1421 = vdwg.mxu0
        %v1422 = vadd.f32 %v1287, %v1406
        %v1423 = vadd.f32 %v1288, %v1419
        %1424 = vst [vmem:[%s332] sm:$0xff] %v1422
        %1425 = vst [vmem:[%s332 + $0x8] sm:$0xff] %v1423
        %s1426 = sand.u32 %s159, 1
        %s1427 = scalar_lea.sflag [#allocation4], %s1426
        %s1428 = sand.u32 %s159, 1
        %s1429 = smul.addr %s1428, 16
        %s1430 = scalar_lea.vmem [#allocation10], %s1429
        // Predicated region
        $region53: #{tpu_custom_call.1} parent=35 // pred_check
          %p1431 = pneg %p169
        $region54: #{tpu_custom_call.1} parent=35 // pred_check_branch
          %1433 = sbr.rel (%p1431) target = $region56
        $region55: #{tpu_custom_call.1} parent=35 // pred_region
          %s1434 = smul.u32 2, %s30
          %1436 = vsyncadd %s1427, 0
          %s1437 = smul.addr %s31, 4
          %s1438 = sadd.s32 %s1434, %s1437
          %s1439 = smul.addr %s1438, 8
          %s1440 = scalar_lea.hbm %s4, %s1439
          %s1442 = sshll.u32 %s1430, 4
          %s1443 = int_to_ptr.vmem [resolvable:$true] %s1442
          %s1444 = sshll.u32 %s1440, 4
          %s1445 = int_to_ptr.hbm [resolvable:$true] %s1444
          %1447 = dma.vmem_to_hbm [thread:$0]  %s1443, 256, %s1445, %s1427
        $region56: #{tpu_custom_call.1} parent=35 // pred_fallthru
          _
      $region36: #{tpu_custom_call.1} parent=5 // pred_fallthru
        _
      %p1448 = scmp.le.s32.totalorder 2, %s20
      // Predicated region
      $region57: #{tpu_custom_call.1} parent=5 // pred_check
        %p1449 = pneg %p1448
      $region58: #{tpu_custom_call.1} parent=5 // pred_check_branch
        %1451 = sbr.rel (%p1449) target = $region60
      $region59: #{tpu_custom_call.1} parent=5 // pred_region
        %s1452 = ssub.s32 %s20, 2
        // Predicated region
        $region61: #{tpu_custom_call.1} parent=59 // pred_check
          %p1453 = pneg %p175
        $region62: #{tpu_custom_call.1} parent=59 // pred_check_branch
          %1455 = sbr.rel (%p1453) target = $region64
        $region63: #{tpu_custom_call.1} parent=59 // pred_region
          %s1456 = sand.u32 %s160, 1
          %s1457 = scalar_lea.sflag [#allocation4], %s1456
          %s1458 = sand.u32 %s160, 1
          %s1459 = smul.addr %s1458, 16
          %s1460 = scalar_lea.vmem [#allocation10], %s1459
          %1462 = dma.done %s1457, 256
        $region64: #{tpu_custom_call.1} parent=59 // pred_fallthru
          _
      $region60: #{tpu_custom_call.1} parent=5 // pred_fallthru
        _
    $region6: #{tpu_custom_call.1} parent=1 // loop_footer
      %s24 = sadd.s32 1, %s20
    $region7: #{tpu_custom_call.1} parent=1 // loop_footer_branch
      %19 = sbr.rel target = $region3
    $region8: #{tpu_custom_call.1} parent=1 // loop_exit
      _
    %1463 = vsyncpa [#allocation3], 1
    %s1464 = scalar_lea.sflag [#allocation3], 1
    %1465 = vsyncpa %s1464, 1
    %1466 = vsyncpa [#allocation6], 1
    %s1467 = scalar_lea.sflag [#allocation6], 1
    %1468 = vsyncpa %s1467, 1
    %1469 = vsyncpa [#allocation9], 1
    %1470 = vsyncpa [#allocation4], 1
    %s1471 = scalar_lea.sflag [#allocation4], 1
    %1472 = vsyncpa %s1471, 1

</llo_original>
